<compile_context>
chip_gen: v7x
topology: tpu7x:2x2x1
jax: 0.10.0
libtpu: 0.0.40
codegen_flags: <defaults>
</compile_context>

<pallas_src>
import jax
import jax.numpy as jnp
from jax.experimental import pallas as pl
from jax.experimental.pallas import tpu as pltpu

EPS = 1e-5
_HEAD_N = 128   # GAP-accumulator lane width (>= tile_b); keeps the head matmul MXU-shaped


# ---------------------------------------------------------------------------
# Fused kernel: stem (1x1 conv + ReLU) -> GAP sum accumulation -> [last spatial step]
#               ClassBlock head (BN1d -> ReLU -> Linear(no bias) -> BN1d), per batch tile.
# ---------------------------------------------------------------------------
def _make_kernel(*, S, tile_s, chunk, needs_mask):
    def kernel(x_ref, stem_ref, w1t_ref, st2_ref, feat_ref, acc_ref):
        s_idx = pl.program_id(1)
        tile_b, cin, _ = x_ref.shape
        in_planes = stem_ref.shape[0]
        n_chunks = tile_s // chunk

        @pl.when(s_idx == 0)
        def _init():
            acc_ref[...] = jnp.zeros_like(acc_ref)

        # Hoisted once per grid step: conv-weight columns and bias, each (in_planes, 1).
        # They lane-broadcast inside the FMAs below (JAX does not CSE broadcast_in_dim,
        # so they must not be rebuilt per chunk iteration).
        wcols = [stem_ref[:, k:k + 1] for k in range(cin)]
        bias = stem_ref[:, cin:cin + 1]

        # ---- stem + GAP partial sums, spatial-on-lanes layout.  Per batch element, loop
        # lane-chunks with fori_loop so the (in_planes, chunk) f32 slab stays in vregs.
        for b in range(tile_b):                       # static unroll, tile_b is small
            def chunk_body(c, col):
                off = pl.multiple_of(c * chunk, chunk)
                xb = x_ref[b, :, pl.ds(off, chunk)]   # (Cin, chunk); rows sublane-broadcast
                h = bias + wcols[0] * xb[0:1, :]      # (in_planes, chunk)
                for k in range(1, cin):               # Cin=4: unrolled VPU FMAs (no MXU)
                    h = h + wcols[k] * xb[k:k + 1, :]
                h = jnp.maximum(h, 0.0)
                if needs_mask:                        # only emitted when spatial was padded
                    pos = (s_idx * tile_s + off
                           + jax.lax.broadcasted_iota(jnp.int32, (1, chunk), 1))
                    h = jnp.where(pos < S, h, 0.0)
                return col + jnp.sum(h, axis=1, keepdims=True)

            col = jax.lax.fori_loop(0, n_chunks, chunk_body,
                                    jnp.zeros((in_planes, 1), jnp.float32))
            acc_ref[:, b:b + 1] += col

        # ---- ClassBlock head once per batch tile, on the last spatial step:
        #      BN1d (folded, incl. 1/(H*W)) -> ReLU -> Linear(no bias) -> BN1d (folded)
        @pl.when(s_idx == pl.num_programs(1) - 1)
        def _head():
            g = acc_ref[...]                              # (in_planes, _HEAD_N) spatial sums
            s1 = stem_ref[:, cin + 1:cin + 2]             # BN1 scale (includes 1/(H*W))
            t1 = stem_ref[:, cin + 2:cin + 3]             # BN1 shift
            hh = jnp.maximum(g * s1 + t1, 0.0)            # (in_planes, _HEAD_N)
            z = jnp.dot(w1t_ref[...], hh,
                        preferred_element_type=jnp.float32)   # (bottleneck, _HEAD_N), f32 MXU
            feat_ref[...] = (z[:, :feat_ref.shape[1]] * st2_ref[:, 0:1]
                             + st2_ref[:, 1:2])           # folded eval-BN2 -> (bottleneck, tile_b)

    return kernel


# ---------------------------------------------------------------------------
# Tiling helpers
# ---------------------------------------------------------------------------
def _round_up(x, m):
    return ((x + m - 1) // m) * m


def _pick_tile_b(batch, cap=8):
    """Largest divisor of `batch` <= cap, keeping >= 2 batch blocks whenever batch >= 2
    (so the leading 'parallel' grid axis can shard across v7x's two TensorCores)."""
    if batch <= 1:
        return 1
    limit = min(cap, max(1, batch // 2))
    for t in range(limit, 0, -1):
        if batch % t == 0:
            return t
    return 1


def _pick_spatial_tile(S, cap):
    cap = max(128, (cap // 128) * 128)
    s128 = _round_up(S, 128)
    tile_s = min(cap, s128)
    s_pad = _round_up(S, tile_s)
    return tile_s, s_pad


def _pick_chunk(tile_s, cap):
    for c in (512, 256, 128):
        if c <= cap and tile_s % c == 0:
            return c
    return 128


# ---------------------------------------------------------------------------
# Parameter construction (deterministic, mimicking the module's __init__ inits)
# ---------------------------------------------------------------------------
def make_params(key, cin, in_planes, bottleneck):
    k1, k2 = jax.random.split(key, 2)

    # synthetic base 1x1 conv: kaiming_normal fan_in (weights_init_kaiming / Conv), bias = 0
    conv_w = (jax.random.normal(k1, (in_planes, cin), jnp.float32)
              * jnp.sqrt(2.0 / cin))                               # PyTorch (out, in) layout
    conv_b = jnp.zeros((in_planes,), jnp.float32)

    # ClassBlock.add_block: BN1d(in_planes) -> ReLU -> Linear(in_planes, 512, no bias) -> BN1d(512)
    bn1_gamma = jnp.ones((in_planes,), jnp.float32)
    bn1_beta = jnp.zeros((in_planes,), jnp.float32)
    bn1_mean = jnp.zeros((in_planes,), jnp.float32)
    bn1_var = jnp.ones((in_planes,), jnp.float32)
    lin1_w = (jax.random.normal(k2, (bottleneck, in_planes), jnp.float32)
              * jnp.sqrt(2.0 / bottleneck))                        # kaiming fan_out, (out, in)
    bn2_gamma = jnp.ones((bottleneck,), jnp.float32)
    bn2_beta = jnp.zeros((bottleneck,), jnp.float32)
    bn2_mean = jnp.zeros((bottleneck,), jnp.float32)
    bn2_var = jnp.ones((bottleneck,), jnp.float32)

    # NOTE: ClassBlock.classifier (Linear(512, num_classes)) exists in the module but its
    # output `y` is dead in eval-mode forward, so it is intentionally not materialized.

    # fold eval-mode BN into scale/shift: y = (x - mean)/sqrt(var+eps)*gamma + beta
    s1 = bn1_gamma / jnp.sqrt(bn1_var + EPS)
    t1 = bn1_beta - bn1_mean * s1
    s2 = bn2_gamma / jnp.sqrt(bn2_var + EPS)
    t2 = bn2_beta - bn2_mean * s2
    return dict(conv_w=conv_w, conv_b=conv_b, s1=s1, t1=t1, lin1_w=lin1_w, s2=s2, t2=t2)


# ---------------------------------------------------------------------------
# Wrapper: Backbone.forward (eval mode) -> returns `feat` (B, 512)
# ---------------------------------------------------------------------------
def backbone_forward(x_nchw, params, *, spatial_tile_cap=8192, chunk_cap=512,
                     batch_tile_cap=8, vmem_limit_bytes=32 * 1024 * 1024):
    B, Cin, H, W = x_nchw.shape
    S = H * W
    in_planes, cin_w = params["conv_w"].shape
    assert cin_w == Cin
    bottleneck = params["lin1_w"].shape[0]

    tile_b = _pick_tile_b(B, batch_tile_cap)
    n_b = B // tile_b
    tile_s, s_pad = _pick_spatial_tile(S, spatial_tile_cap)
    n_s = s_pad // tile_s
    chunk = _pick_chunk(tile_s, max(128, chunk_cap))
    needs_mask = (s_pad != S)

    # (B, Cin, H, W) -> (B, Cin, H*W): pure reshape, no transpose/cast pass over HBM.
    x3 = x_nchw.reshape(B, Cin, S)
    if needs_mask:
        x3 = jnp.pad(x3, ((0, 0), (0, 0), (0, s_pad - S)))

    # consolidated weight-side inputs (fewer inputs, less per-step bookkeeping / VMEM)
    stem = jnp.concatenate(
        [params["conv_w"].astype(jnp.float32),                    # (in_planes, Cin)
         params["conv_b"].reshape(in_planes, 1),
         (params["s1"] / S).reshape(in_planes, 1),                # fold GAP's 1/(H*W) into BN1
         params["t1"].reshape(in_planes, 1)], axis=1)             # -> (in_planes, Cin + 3)
    w1t = params["lin1_w"].astype(jnp.float32)                    # (bottleneck, in_planes)
    st2 = jnp.stack([params["s2"], params["t2"]], axis=1)         # (bottleneck, 2)

    kernel = _make_kernel(S=S, tile_s=tile_s, chunk=chunk, needs_mask=needs_mask)

    cost = pl.CostEstimate(
        flops=2 * B * S * Cin * in_planes + 2 * B * in_planes * bottleneck,
        transcendentals=0,
        bytes_accessed=(x3.size * 4 + stem.size * 4 + w1t.size * 4 + st2.size * 4
                        + n_b * bottleneck * tile_b * 4),
    )

    out = pl.pallas_call(
        kernel,
        out_shape=jax.ShapeDtypeStruct((n_b, bottleneck, tile_b), jnp.float32),
        grid_spec=pltpu.PrefetchScalarGridSpec(
            num_scalar_prefetch=0,
            grid=(n_b, n_s),                                      # (batch tiles, spatial tiles)
            in_specs=[
                pl.BlockSpec((tile_b, Cin, tile_s), lambda b, s: (b, 0, s)),    # x
                pl.BlockSpec((in_planes, Cin + 3), lambda b, s: (0, 0)),        # wT|bias|s1|t1
                pl.BlockSpec((bottleneck, in_planes), lambda b, s: (0, 0)),     # lin1 weight
                pl.BlockSpec((bottleneck, 2), lambda b, s: (0, 0)),             # s2|t2
            ],
            out_specs=pl.BlockSpec((None, bottleneck, tile_b), lambda b, s: (b, 0, 0)),
            scratch_shapes=[pltpu.VMEM((in_planes, _HEAD_N), jnp.float32)],     # GAP accumulator
        ),
        compiler_params=pltpu.CompilerParams(
            dimension_semantics=("parallel", "arbitrary"),        # batch shards across TCs
            vmem_limit_bytes=vmem_limit_bytes,                    # safe on v5e/v6e/v7x
        ),
        cost_estimate=cost,
    )(x3, stem, w1t, st2)

    # (n_b, bottleneck, tile_b) -> (B, bottleneck): tiny layout fixup on a (B x 512) tensor.
    return jnp.swapaxes(out, 1, 2).reshape(B, bottleneck)


# ---------------------------------------------------------------------------
# Pure-JAX reference (f32 end-to-end) for a correctness check
# ---------------------------------------------------------------------------
def reference_forward(x_nchw, params):
    B, Cin, H, W = x_nchw.shape
    xf = x_nchw.reshape(B, Cin, H * W).astype(jnp.float32)
    h = jnp.maximum(
        jnp.einsum("pc,bcs->bps", params["conv_w"], xf,
                   precision=jax.lax.Precision.HIGHEST)
        + params["conv_b"][None, :, None], 0.0)
    g = jnp.mean(h, axis=2)                                           # GAP -> (B, in_planes)
    hh = jnp.maximum(g * params["s1"] + params["t1"], 0.0)            # BN1 (eval) + ReLU
    z = jnp.dot(hh, params["lin1_w"].T,
                precision=jax.lax.Precision.HIGHEST)                  # Linear(in_planes, 512)
    return z * params["s2"] + params["t2"]                            # BN2 (eval)


if __name__ == "__main__":
    # Small shapes consistent with the module's forward
    B, Cin, H, W = 2, 4, 16, 16
    IN_PLANES = 64       # self.in_planes of the (synthetic) base
    BOTTLENECK = 512     # ClassBlock(num_bottleneck=512)

    key = jax.random.PRNGKey(0)
    kx, kp = jax.random.split(key)
    x = jax.random.normal(kx, (B, Cin, H, W), jnp.float32)   # NCHW, like PyTorch
    params = make_params(kp, Cin, IN_PLANES, BOTTLENECK)
    ref = reference_forward(x, params)

    # config 1: default caps (single spatial step / single chunk at this demo size)
    feat = backbone_forward(x, params)
    jax.block_until_ready(feat)
    assert feat.shape == (B, BOTTLENECK) and feat.dtype == jnp.float32
    err1 = float(jnp.max(jnp.abs(feat - ref)))
    assert jnp.allclose(feat, ref, atol=1e-2, rtol=1e-2), err1

    # config 2: small spatial tiles -> exercises the cross-step GAP accumulator
    feat2 = backbone_forward(x, params, spatial_tile_cap=128)
    jax.block_until_ready(feat2)
    err2 = float(jnp.max(jnp.abs(feat2 - ref)))
    assert jnp.allclose(feat2, ref, atol=1e-2, rtol=1e-2), err2

    # config 3: small chunks -> exercises the in-kernel chunked fori_loop
    feat3 = backbone_forward(x, params, spatial_tile_cap=256, chunk_cap=128)
    jax.block_until_ready(feat3)
    err3 = float(jnp.max(jnp.abs(feat3 - ref)))
    assert jnp.allclose(feat3, ref, atol=1e-2, rtol=1e-2), err3

    print("KERNEL_OK")
</pallas_src>

<mosaic_0001>
module attributes {stable_mosaic.version = 11 : i64} {
  func.func @kernel(%arg0: i32, %arg1: i32, %arg2: memref<1x4x256xf32, #tpu.memory_space<vmem>>, %arg3: memref<64x7xf32, #tpu.memory_space<vmem>>, %arg4: memref<512x64xf32, #tpu.memory_space<vmem>>, %arg5: memref<512x2xf32, #tpu.memory_space<vmem>>, %arg6: memref<1x512x1xf32, #tpu.memory_space<vmem>>, %arg7: memref<64x128xf32, #tpu.memory_space<vmem>>) attributes {dimension_semantics = [#tpu.dimension_semantics<parallel>, #tpu.dimension_semantics<arbitrary>], iteration_bounds = array<i64: 2, 1>, scalar_prefetch = 0 : i64, scratch_operands = 1 : i64, tpu.core_type = #tpu.core_type<tc>, window_params = [{transform_indices = @transform_0, window_bounds = array<i64: 1, 4, 256>}, {pipeline_mode = #tpu.pipeline_mode<synchronous>, transform_indices = @transform_1, window_bounds = array<i64: 64, 7>}, {pipeline_mode = #tpu.pipeline_mode<synchronous>, transform_indices = @transform_2, window_bounds = array<i64: 512, 64>}, {pipeline_mode = #tpu.pipeline_mode<synchronous>, transform_indices = @transform_3, window_bounds = array<i64: 512, 2>}, {transform_indices = @transform_4, window_bounds = array<i64: 1, 512, 1>}]} {
    %c0_i32 = arith.constant 0 : i32
    %0 = arith.cmpi eq, %arg1, %c0_i32 : i32
    %1 = arith.extui %0 : i1 to i32
    %c0_i32_0 = arith.constant 0 : i32
    %2 = arith.cmpi ne, %1, %c0_i32_0 : i32
    scf.if %2 {
      %cst_17 = arith.constant 0.000000e+00 : f32
      %46 = vector.broadcast %cst_17 : f32 to vector<64x128xf32>
      %c0_18 = arith.constant 0 : index
      %c0_19 = arith.constant 0 : index
      %47 = vector.load %arg7[%c0_18, %c0_19] : memref<64x128xf32, #tpu.memory_space<vmem>>, vector<64x128xf32>
      tpu.vector_store %arg7[%c0_18, %c0_19], %46 {strides = array<i32>} : memref<64x128xf32, #tpu.memory_space<vmem>>, vector<64x128xf32>,
    } else {
    }
    %c0 = arith.constant 0 : index
    %c0_1 = arith.constant 0 : index
    %3 = vector.load %arg3[%c0, %c0_1] : memref<64x7xf32, #tpu.memory_space<vmem>>, vector<64x1xf32>
    %c0_2 = arith.constant 0 : index
    %c1 = arith.constant 1 : index
    %4 = vector.load %arg3[%c0_2, %c1] : memref<64x7xf32, #tpu.memory_space<vmem>>, vector<64x1xf32>
    %c0_3 = arith.constant 0 : index
    %c2 = arith.constant 2 : index
    %5 = vector.load %arg3[%c0_3, %c2] : memref<64x7xf32, #tpu.memory_space<vmem>>, vector<64x1xf32>
    %c0_4 = arith.constant 0 : index
    %c3 = arith.constant 3 : index
    %6 = vector.load %arg3[%c0_4, %c3] : memref<64x7xf32, #tpu.memory_space<vmem>>, vector<64x1xf32>
    %c0_5 = arith.constant 0 : index
    %c4 = arith.constant 4 : index
    %7 = vector.load %arg3[%c0_5, %c4] : memref<64x7xf32, #tpu.memory_space<vmem>>, vector<64x1xf32>
    %cst = arith.constant 0.000000e+00 : f32
    %8 = vector.broadcast %cst : f32 to vector<64x1xf32>
    %c0_i32_6 = arith.constant 0 : i32
    %c256_i32 = arith.constant 256 : i32
    %9 = arith.muli %c0_i32_6, %c256_i32 : i32
    %10 = tpu.assume_multiple %9, 256 : i32
    %c0_7 = arith.constant 0 : index
    %c0_8 = arith.constant 0 : index
    %11 = arith.index_cast %10 : i32 to index
    %12 = vector.load %arg2[%c0_7, %c0_8, %11] : memref<1x4x256xf32, #tpu.memory_space<vmem>>, vector<1x4x256xf32>
    %13 = vector.shape_cast %12 : vector<1x4x256xf32> to vector<4x256xf32>
    %14 = vector.extract_strided_slice %13 {offsets = [0, 0], sizes = [1, 256], strides = [1, 1]} : vector<4x256xf32> to vector<1x256xf32>
    %15 = vector.broadcast %3 : vector<64x1xf32> to vector<64x256xf32>
    %16 = vector.broadcast %14 : vector<1x256xf32> to vector<64x256xf32>
    %17 = arith.mulf %15, %16 : vector<64x256xf32>
    %18 = vector.broadcast %7 : vector<64x1xf32> to vector<64x256xf32>
    %19 = arith.addf %18, %17 : vector<64x256xf32>
    %20 = vector.extract_strided_slice %13 {offsets = [1, 0], sizes = [1, 256], strides = [1, 1]} : vector<4x256xf32> to vector<1x256xf32>
    %21 = vector.broadcast %4 : vector<64x1xf32> to vector<64x256xf32>
    %22 = vector.broadcast %20 : vector<1x256xf32> to vector<64x256xf32>
    %23 = arith.mulf %21, %22 : vector<64x256xf32>
    %24 = arith.addf %19, %23 : vector<64x256xf32>
    %25 = vector.extract_strided_slice %13 {offsets = [2, 0], sizes = [1, 256], strides = [1, 1]} : vector<4x256xf32> to vector<1x256xf32>
    %26 = vector.broadcast %5 : vector<64x1xf32> to vector<64x256xf32>
    %27 = vector.broadcast %25 : vector<1x256xf32> to vector<64x256xf32>
    %28 = arith.mulf %26, %27 : vector<64x256xf32>
    %29 = arith.addf %24, %28 : vector<64x256xf32>
    %30 = vector.extract_strided_slice %13 {offsets = [3, 0], sizes = [1, 256], strides = [1, 1]} : vector<4x256xf32> to vector<1x256xf32>
    %31 = vector.broadcast %6 : vector<64x1xf32> to vector<64x256xf32>
    %32 = vector.broadcast %30 : vector<1x256xf32> to vector<64x256xf32>
    %33 = arith.mulf %31, %32 : vector<64x256xf32>
    %34 = arith.addf %29, %33 : vector<64x256xf32>
    %cst_9 = arith.constant 0.000000e+00 : f32
    %35 = vector.broadcast %cst_9 : f32 to vector<64x256xf32>
    %36 = arith.maximumf %34, %35 : vector<64x256xf32>
    %cst_10 = arith.constant dense<0.000000e+00> : vector<64xf32>
    %37 = vector.multi_reduction <add>, %36, %cst_10 [1] : vector<64x256xf32> to vector<64xf32>
    %38 = vector.shape_cast %37 : vector<64xf32> to vector<64x1xf32>
    %39 = arith.addf %8, %38 : vector<64x1xf32>
    %c1_i32 = arith.constant 1 : i32
    %c0_11 = arith.constant 0 : index
    %c0_12 = arith.constant 0 : index
    %40 = vector.load %arg7[%c0_11, %c0_12] : memref<64x128xf32, #tpu.memory_space<vmem>>, vector<64x1xf32>
    %41 = arith.addf %40, %39 : vector<64x1xf32>
    %c0_13 = arith.constant 0 : index
    %c0_14 = arith.constant 0 : index
    %42 = vector.load %arg7[%c0_13, %c0_14] : memref<64x128xf32, #tpu.memory_space<vmem>>, vector<64x1xf32>
    tpu.vector_store %arg7[%c0_13, %c0_14], %41 {strides = array<i32>} : memref<64x128xf32, #tpu.memory_space<vmem>>, vector<64x1xf32>,
    %c0_i32_15 = arith.constant 0 : i32
    %43 = arith.cmpi eq, %arg1, %c0_i32_15 : i32
    %44 = arith.extui %43 : i1 to i32
    %c0_i32_16 = arith.constant 0 : i32
    %45 = arith.cmpi ne, %44, %c0_i32_16 : i32
    scf.if %45 {
      %c0_17 = arith.constant 0 : index
      %c0_18 = arith.constant 0 : index
      %46 = vector.load %arg7[%c0_17, %c0_18] : memref<64x128xf32, #tpu.memory_space<vmem>>, vector<64x128xf32>
      %c0_19 = arith.constant 0 : index
      %c5 = arith.constant 5 : index
      %47 = vector.load %arg3[%c0_19, %c5] : memref<64x7xf32, #tpu.memory_space<vmem>>, vector<64x1xf32>
      %c0_20 = arith.constant 0 : index
      %c6 = arith.constant 6 : index
      %48 = vector.load %arg3[%c0_20, %c6] : memref<64x7xf32, #tpu.memory_space<vmem>>, vector<64x1xf32>
      %49 = vector.broadcast %47 : vector<64x1xf32> to vector<64x128xf32>
      %50 = arith.mulf %46, %49 : vector<64x128xf32>
      %51 = vector.broadcast %48 : vector<64x1xf32> to vector<64x128xf32>
      %52 = arith.addf %50, %51 : vector<64x128xf32>
      %cst_21 = arith.constant 0.000000e+00 : f32
      %53 = vector.broadcast %cst_21 : f32 to vector<64x128xf32>
      %54 = arith.maximumf %52, %53 : vector<64x128xf32>
      %c0_22 = arith.constant 0 : index
      %c0_23 = arith.constant 0 : index
      %55 = vector.load %arg4[%c0_22, %c0_23] : memref<512x64xf32, #tpu.memory_space<vmem>>, vector<512x64xf32>
      %cst_24 = arith.constant dense<0.000000e+00> : vector<512x128xf32>
      %56 = tpu.matmul %55, %54, %cst_24 {dimension_numbers = #tpu.dot_dimension_numbers<[1], [0], [0], [1], [0, 0, 1, 1], [], []>} : vector<512x64xf32>, vector<64x128xf32>, vector<512x128xf32> -> vector<512x128xf32>
      %57 = vector.extract_strided_slice %56 {offsets = [0, 0], sizes = [512, 1], strides = [1, 1]} : vector<512x128xf32> to vector<512x1xf32>
      %c0_25 = arith.constant 0 : index
      %c0_26 = arith.constant 0 : index
      %58 = vector.load %arg5[%c0_25, %c0_26] : memref<512x2xf32, #tpu.memory_space<vmem>>, vector<512x1xf32>
      %59 = arith.mulf %57, %58 : vector<512x1xf32>
      %c0_27 = arith.constant 0 : index
      %c1_28 = arith.constant 1 : index
      %60 = vector.load %arg5[%c0_27, %c1_28] : memref<512x2xf32, #tpu.memory_space<vmem>>, vector<512x1xf32>
      %61 = arith.addf %59, %60 : vector<512x1xf32>
      %c0_29 = arith.constant 0 : index
      %c0_30 = arith.constant 0 : index
      %c0_31 = arith.constant 0 : index
      %62 = vector.load %arg6[%c0_29, %c0_30, %c0_31] : memref<1x512x1xf32, #tpu.memory_space<vmem>>, vector<1x512x1xf32>
      %63 = vector.shape_cast %62 : vector<1x512x1xf32> to vector<512x1xf32>
      %64 = vector.shape_cast %61 : vector<512x1xf32> to vector<1x512x1xf32>
      tpu.vector_store %arg6[%c0_29, %c0_30, %c0_31], %64 {strides = array<i32>} : memref<1x512x1xf32, #tpu.memory_space<vmem>>, vector<1x512x1xf32>,
    } else {
    }
    return
  }
  func.func @transform_0(%arg0: i32, %arg1: i32) -> (i32, i32, i32) {
    %c0_i32 = arith.constant 0 : i32
    %c0_i32_0 = arith.constant 0 : i32
    return %arg0, %c0_i32, %arg1 : i32, i32, i32
  }
  func.func @transform_1(%arg0: i32, %arg1: i32) -> (i32, i32) {
    %c0_i32 = arith.constant 0 : i32
    %c0_i32_0 = arith.constant 0 : i32
    %c0_i32_1 = arith.constant 0 : i32
    return %c0_i32, %c0_i32_0 : i32, i32
  }
  func.func @transform_2(%arg0: i32, %arg1: i32) -> (i32, i32) {
    %c0_i32 = arith.constant 0 : i32
    %c0_i32_0 = arith.constant 0 : i32
    %c0_i32_1 = arith.constant 0 : i32
    return %c0_i32, %c0_i32_0 : i32, i32
  }
  func.func @transform_3(%arg0: i32, %arg1: i32) -> (i32, i32) {
    %c0_i32 = arith.constant 0 : i32
    %c0_i32_0 = arith.constant 0 : i32
    %c0_i32_1 = arith.constant 0 : i32
    return %c0_i32, %c0_i32_0 : i32, i32
  }
  func.func @transform_4(%arg0: i32, %arg1: i32) -> (i32, i32, i32) {
    %c0_i32 = arith.constant 0 : i32
    %c0_i32_0 = arith.constant 0 : i32
    %c0_i32_1 = arith.constant 0 : i32
    return %arg0, %c0_i32, %c0_i32_0 : i32, i32, i32
  }
}

</mosaic_0001>

<llo_original>
// kernel: tpu_custom_call.1
$region0: #{tpu_custom_call.1}
  #allocation0 [shape = 'u32[]', space=smem, size = 0x4, offset = 0x4, fixed_abs, tag = 'smem constant byte address 0x4 - core index']
  #allocation1 [shape = 'u32[144,128]{1,0:T(1,128)}', space=vmem, size = 0x12000, scoped, tag = 'internal scratch']
  #allocation2 [shape = 'f32[64,128]{1,0:T(8,128)}', space=vmem, size = 0x8000, scoped, tag = 'scratch operand']
  %s0 = inlined_call_operand.vmem [shape: f32[2,4,256], index: 0, kind: input, shape index: {}]
  %s1 = inlined_call_operand.vmem [shape: f32[64,7], index: 1, kind: input, shape index: {}]
  %s2 = inlined_call_operand.vmem [shape: f32[512,64], index: 2, kind: input, shape index: {}]
  %s3 = inlined_call_operand.vmem [shape: f32[512,2], index: 3, kind: input, shape index: {}]
  %s4 = inlined_call_operand.vmem [shape: f32[2,512,1], index: 4, kind: output, shape index: {}]
  %s5 = sld [smem:[#allocation0]]
  $region57: #{tpu_custom_call.1} parent=0
    _
  %s7 = ssub.s32 1, %s5
  %s8 = scalar_select 0, %s7, %s5
  loop: start=0, step=1, limit=4
  $region2: #{tpu_custom_call.1} parent=0 // loop_pre_header
    _
  $region3: #{tpu_custom_call.1} parent=0 // loop_header
    %s10 = sphi 0, %s14
    %p11 = scmp.ge.s32.totalorder %s10, 4
    %s17 = sphi 0, %s29
    %s18 = sphi 0, %s25
    %s19 = sphi 0, %s17
    %s20 = sphi 0, %s18
    %s21 = sphi 0, %s19
    %s22 = sphi 0, %s20
    %s34 = sphi 0, %s36
    %s37 = sphi 0, %s34
    %s38 = sphi 0, %s37
    %s54 = sphi 0, %s38
    %s58 = sphi 0, %s58
    %s60 = sphi 0, %s58
    %s61 = sphi 0, %s60
    %s75 = sphi 0, %s61
    %s79 = sphi 0, %s79
    %s81 = sphi 0, %s79
    %s82 = sphi 0, %s81
    %s96 = sphi 0, %s82
    %s100 = sphi 0, %s100
    %s102 = sphi 0, %s100
    %s103 = sphi 0, %s102
    %s117 = sphi 0, %s103
    %s123 = sphi 0, %s125
    %s126 = sphi 0, %s123
    %s127 = sphi 0, %s126
    %s143 = sphi 0, %s127
  $region4: #{tpu_custom_call.1} parent=0 // loop_header_branch
    %13 = sbr.rel (%p11) target = $region8
  $region5: #{tpu_custom_call.1} parent=0 // loop_body
    %s15 = ssub.s32 %s10, 1
    %s16 = ssub.s32 %s10, 2
    %s23 = sadd.s32 1, %s18
    %p24 = scmp.ge.s32.totalorder %s23, 1
    %s25 = scalar_select %p24, 0, %s23
    %s26 = sadd.s32 1, %s17
    %s27 = scalar_select %p24, %s26, %s17
    %p28 = scmp.ge.s32.totalorder %s27, 2
    %s29 = scalar_select %p28, 0, %s27
    %s30 = ssub.s32 %s17, %s29
    %s31 = ssub.s32 %s18, %s25
    %s32 = sor.u32 %s30, %s31
    %p33 = scmp.eq.s32.totalorder %s32, 0
    %s35 = sadd.s32 %s34, 1
    %s36 = scalar_select %p33, %s34, %s35
    %p39 = pneg %p33
    %p40 = scmp.eq.s32.totalorder %s10, 1
    %p41 = por %p39, %p40
    %p42 = scmp.ne.s32.totalorder %s34, %s37
    %p43 = scmp.eq.s32.totalorder %s10, 0
    %p44 = por %p42, %p43
    %p45 = scmp.ne.s32.totalorder %s34, %s37
    %p46 = scmp.eq.s32.totalorder %s15, 1
    %p47 = por %p45, %p46
    %p48 = scmp.ne.s32.totalorder %s37, %s38
    %p49 = scmp.eq.s32.totalorder %s15, 0
    %p50 = por %p48, %p49
    %p51 = scmp.ne.s32.totalorder %s37, %s38
    %p52 = scmp.eq.s32.totalorder %s16, 1
    %p53 = por %p51, %p52
    %p55 = scmp.ne.s32.totalorder %s38, %s54
    %p56 = scmp.eq.s32.totalorder %s16, 0
    %p57 = por %p55, %p56
    %s59 = sadd.s32 %s58, 1
    %p62 = scmp.eq.s32.totalorder %s10, 1
    %p63 = scmp.ne.s32.totalorder %s58, %s60
    %p64 = scmp.eq.s32.totalorder %s10, 0
    %p65 = por %p63, %p64
    %p66 = scmp.ne.s32.totalorder %s58, %s60
    %p67 = scmp.eq.s32.totalorder %s15, 1
    %p68 = por %p66, %p67
    %p69 = scmp.ne.s32.totalorder %s60, %s61
    %p70 = scmp.eq.s32.totalorder %s15, 0
    %p71 = por %p69, %p70
    %p72 = scmp.ne.s32.totalorder %s60, %s61
    %p73 = scmp.eq.s32.totalorder %s16, 1
    %p74 = por %p72, %p73
    %p76 = scmp.ne.s32.totalorder %s61, %s75
    %p77 = scmp.eq.s32.totalorder %s16, 0
    %p78 = por %p76, %p77
    %s80 = sadd.s32 %s79, 1
    %p83 = scmp.eq.s32.totalorder %s10, 1
    %p84 = scmp.ne.s32.totalorder %s79, %s81
    %p85 = scmp.eq.s32.totalorder %s10, 0
    %p86 = por %p84, %p85
    %p87 = scmp.ne.s32.totalorder %s79, %s81
    %p88 = scmp.eq.s32.totalorder %s15, 1
    %p89 = por %p87, %p88
    %p90 = scmp.ne.s32.totalorder %s81, %s82
    %p91 = scmp.eq.s32.totalorder %s15, 0
    %p92 = por %p90, %p91
    %p93 = scmp.ne.s32.totalorder %s81, %s82
    %p94 = scmp.eq.s32.totalorder %s16, 1
    %p95 = por %p93, %p94
    %p97 = scmp.ne.s32.totalorder %s82, %s96
    %p98 = scmp.eq.s32.totalorder %s16, 0
    %p99 = por %p97, %p98
    %s101 = sadd.s32 %s100, 1
    %p104 = scmp.eq.s32.totalorder %s10, 1
    %p105 = scmp.ne.s32.totalorder %s100, %s102
    %p106 = scmp.eq.s32.totalorder %s10, 0
    %p107 = por %p105, %p106
    %p108 = scmp.ne.s32.totalorder %s100, %s102
    %p109 = scmp.eq.s32.totalorder %s15, 1
    %p110 = por %p108, %p109
    %p111 = scmp.ne.s32.totalorder %s102, %s103
    %p112 = scmp.eq.s32.totalorder %s15, 0
    %p113 = por %p111, %p112
    %p114 = scmp.ne.s32.totalorder %s102, %s103
    %p115 = scmp.eq.s32.totalorder %s16, 1
    %p116 = por %p114, %p115
    %p118 = scmp.ne.s32.totalorder %s103, %s117
    %p119 = scmp.eq.s32.totalorder %s16, 0
    %p120 = por %p118, %p119
    %s121 = ssub.s32 %s17, %s29
    %p122 = scmp.eq.s32.totalorder %s121, 0
    %s124 = sadd.s32 %s123, 1
    %s125 = scalar_select %p122, %s123, %s124
    %p128 = pneg %p122
    %p129 = scmp.eq.s32.totalorder %s10, 1
    %p130 = por %p128, %p129
    %p131 = scmp.ne.s32.totalorder %s123, %s126
    %p132 = scmp.eq.s32.totalorder %s10, 0
    %p133 = por %p131, %p132
    %p134 = scmp.ne.s32.totalorder %s123, %s126
    %p135 = scmp.eq.s32.totalorder %s15, 1
    %p136 = por %p134, %p135
    %p137 = scmp.ne.s32.totalorder %s126, %s127
    %p138 = scmp.eq.s32.totalorder %s15, 0
    %p139 = por %p137, %p138
    %p140 = scmp.ne.s32.totalorder %s126, %s127
    %p141 = scmp.eq.s32.totalorder %s16, 1
    %p142 = por %p140, %p141
    %p144 = scmp.ne.s32.totalorder %s127, %s143
    %p145 = scmp.eq.s32.totalorder %s16, 0
    %p146 = por %p144, %p145
    %p147 = scmp.le.s32.totalorder 1, %s10
    %p148 = scmp.lt.s32.totalorder %s10, 3
    %p149 = pnand %p147, %p148
    %p150 = pneg %p149
    // Predicated region
    $region9: #{tpu_custom_call.1} parent=5 // pred_check
      _
    $region10: #{tpu_custom_call.1} parent=5 // pred_check_branch
      %152 = sbr.rel (%p149) target = $region12
    $region11: #{tpu_custom_call.1} parent=5 // pred_region
      %s153 = ssub.s32 %s10, 1
      // Predicated region
      $region13: #{tpu_custom_call.1} parent=11 // pred_check
        %p154 = pneg %p71
      $region14: #{tpu_custom_call.1} parent=11 // pred_check_branch
        %156 = sbr.rel (%p154) target = $region16
      $region15: #{tpu_custom_call.1} parent=11 // pred_region
        _
      $region16: #{tpu_custom_call.1} parent=11 // pred_fallthru
        _
      // Predicated region
      $region17: #{tpu_custom_call.1} parent=11 // pred_check
        %p157 = pneg %p92
      $region18: #{tpu_custom_call.1} parent=11 // pred_check_branch
        %159 = sbr.rel (%p157) target = $region20
      $region19: #{tpu_custom_call.1} parent=11 // pred_region
        _
      $region20: #{tpu_custom_call.1} parent=11 // pred_fallthru
        _
      // Predicated region
      $region21: #{tpu_custom_call.1} parent=11 // pred_check
        %p160 = pneg %p113
      $region22: #{tpu_custom_call.1} parent=11 // pred_check_branch
        %162 = sbr.rel (%p160) target = $region24
      $region23: #{tpu_custom_call.1} parent=11 // pred_region
        _
      $region24: #{tpu_custom_call.1} parent=11 // pred_fallthru
        _
    $region12: #{tpu_custom_call.1} parent=5 // pred_fallthru
      _
    %p163 = scmp.lt.s32.totalorder %s10, 2
    // Predicated region
    $region25: #{tpu_custom_call.1} parent=5 // pred_check
      %p164 = pneg %p163
    $region26: #{tpu_custom_call.1} parent=5 // pred_check_branch
      %166 = sbr.rel (%p164) target = $region28
    $region27: #{tpu_custom_call.1} parent=5 // pred_region
      // Predicated region
      $region29: #{tpu_custom_call.1} parent=27 // pred_check
        %p167 = pneg %p44
      $region30: #{tpu_custom_call.1} parent=27 // pred_check_branch
        %169 = sbr.rel (%p167) target = $region32
      $region31: #{tpu_custom_call.1} parent=27 // pred_region
        %s170 = smul.u32 2, %s18
        %p171 = scmp.lt.s32.totalorder %s17, 1
        %s172 = scalar_select %p171, %s17, 1
        %p173 = scmp.lt.s32.totalorder %s170, 1
        %s174 = scalar_select %p173, %s170, 1
        %s175 = smul.addr %s172, 2
        %s176 = sadd.s32 %s174, %s175
        %s177 = smul.addr %s176, 4
        %s178 = scalar_lea.vmem %s0, %s177
        %s179 = smul.u32 2, %s18
      $region32: #{tpu_custom_call.1} parent=27 // pred_fallthru
        _
    $region28: #{tpu_custom_call.1} parent=5 // pred_fallthru
      _
    %p180 = scmp.le.s32.totalorder 1, %s10
    %p181 = scmp.lt.s32.totalorder %s10, 3
    %p182 = pnand %p180, %p181
    %p183 = pneg %p182
    // Predicated region
    $region33: #{tpu_custom_call.1} parent=5 // pred_check
      _
    $region34: #{tpu_custom_call.1} parent=5 // pred_check_branch
      %185 = sbr.rel (%p182) target = $region36
    $region35: #{tpu_custom_call.1} parent=5 // pred_region
      %s186 = ssub.s32 %s10, 1
      %s187 = smul.u32 2, %s20
      %p188 = scmp.lt.s32.totalorder %s19, 1
      %s189 = scalar_select %p188, %s19, 1
      %p190 = scmp.lt.s32.totalorder %s187, 1
      %s191 = scalar_select %p190, %s187, 1
      %s192 = smul.addr %s189, 2
      %s193 = sadd.s32 %s191, %s192
      %s194 = smul.addr %s193, 4
      %s195 = scalar_lea.vmem %s0, %s194
      %p196 = pneg %p50
      %p197 = pneg %p47
      %p198 = pneg %p71
      %p199 = pneg %p68
      %p200 = pneg %p92
      %p201 = pneg %p89
      %p202 = pneg %p113
      %p203 = pneg %p110
      %p204 = pneg %p139
      %p205 = pneg %p136
      %p206 = scmp.lt.s32.totalorder %s19, 1
      %s207 = scalar_select %p206, %s19, 1
      %s208 = smul.addr %s207, 64
      %s209 = smul.addr %s208, 8
      %s210 = scalar_lea.vmem %s4, %s209
      %s211 = smul.u32 2, %s20
      %p212 = scmp.lt.s32.totalorder %s19, 1
      %s213 = scalar_select %p212, %s19, 1
      %p214 = scmp.lt.s32.totalorder %s211, 1
      %s215 = scalar_select %p214, %s211, 1
      %s216 = smul.addr %s213, 2
      %s217 = sadd.s32 %s215, %s216
      %s218 = smul.addr %s217, 4
      %s219 = scalar_lea.vmem %s0, %s218
      %s220 = smul.u32 2, %s20
      %p221 = scmp.lt.s32.totalorder %s19, 1
      %s222 = scalar_select %p221, %s19, 1
      %s223 = smul.addr %s222, 64
      %s224 = smul.addr %s223, 8
      %s225 = scalar_lea.vmem %s4, %s224
      %p226 = scmp.eq.s32.totalorder %s20, 0
      // Predicated region
      $region37: #{tpu_custom_call.1} parent=35 // pred_check
        %p227 = pneg %p226
      $region38: #{tpu_custom_call.1} parent=35 // pred_check_branch
        %229 = sbr.rel (%p227) target = $region40
      $region39: #{tpu_custom_call.1} parent=35 // pred_region
        %230 = vst [vmem:[#allocation2] sm:$0xff] 0.0
        %231 = vst [vmem:[#allocation2 + $0x8] sm:$0xff] 0.0
        %232 = vst [vmem:[#allocation2 + $0x10] sm:$0xff] 0.0
        %233 = vst [vmem:[#allocation2 + $0x18] sm:$0xff] 0.0
        %234 = vst [vmem:[#allocation2 + $0x20] sm:$0xff] 0.0
        %235 = vst [vmem:[#allocation2 + $0x28] sm:$0xff] 0.0
        %236 = vst [vmem:[#allocation2 + $0x30] sm:$0xff] 0.0
        %237 = vst [vmem:[#allocation2 + $0x38] sm:$0xff] 0.0
      $region40: #{tpu_custom_call.1} parent=35 // pred_fallthru
        _
      %v238 = vld [vmem:[%s1] sm:$0xff]
      %v239 = vld [vmem:[%s1 + $0x8] sm:$0xff]
      %v240 = vld [vmem:[%s1 + $0x10] sm:$0xff]
      %v241 = vld [vmem:[%s1 + $0x18] sm:$0xff]
      %v242 = vld [vmem:[%s1 + $0x20] sm:$0xff]
      %v243 = vld [vmem:[%s1 + $0x28] sm:$0xff]
      %v244 = vld [vmem:[%s1 + $0x30] sm:$0xff]
      %v245 = vld [vmem:[%s1 + $0x38] sm:$0xff]
      %v246 = vld [vmem:[%s219] sm:$0xff]
      %248 = vset.pattern.permute.xlu0 0
      %249 = vperm.xlu0 %248, %v238
      %v250 = vpop.permute.xlu0 %249
      %253 = vset.pattern.permute.xlu0 0
      %254 = vperm.xlu0 %253, %v239
      %v255 = vpop.permute.xlu0 %254
      %258 = vset.pattern.permute.xlu0 0
      %259 = vperm.xlu0 %258, %v240
      %v260 = vpop.permute.xlu0 %259
      %263 = vset.pattern.permute.xlu0 0
      %264 = vperm.xlu0 %263, %v241
      %v265 = vpop.permute.xlu0 %264
      %268 = vset.pattern.permute.xlu0 0
      %269 = vperm.xlu0 %268, %v242
      %v270 = vpop.permute.xlu0 %269
      %273 = vset.pattern.permute.xlu0 0
      %274 = vperm.xlu0 %273, %v243
      %v275 = vpop.permute.xlu0 %274
      %278 = vset.pattern.permute.xlu0 0
      %279 = vperm.xlu0 %278, %v244
      %v280 = vpop.permute.xlu0 %279
      %283 = vset.pattern.permute.xlu0 0
      %284 = vperm.xlu0 %283, %v245
      %v285 = vpop.permute.xlu0 %284
      %v288 = vlaneseq
      %v289 = vshrl.u32 %v288, 7
      %v290 = vsub.s32 0, %v289
      %v291 = vrot.slane %v246, %v290
      %v292 = vlaneseq
      %v293 = vshrl.u32 %v292, 7
      %v294 = vsub.s32 4, %v293
      %v295 = vrot.slane %v246, %v294
      %v298 = vlaneseq
      %v299 = vshrl.u32 %v298, 7
      %v300 = vsub.s32 0, %v299
      %v301 = vrot.slane %v291, %v300
      %v302 = vlaneseq
      %v303 = vshrl.u32 %v302, 7
      %v304 = vsub.s32 0, %v303
      %v305 = vrot.slane %v295, %v304
      %v306 = vmul.f32 %v250, %v301
      %v307 = vmul.f32 %v250, %v305
      %v308 = vmul.f32 %v255, %v301
      %v309 = vmul.f32 %v255, %v305
      %v310 = vmul.f32 %v260, %v301
      %v311 = vmul.f32 %v260, %v305
      %v312 = vmul.f32 %v265, %v301
      %v313 = vmul.f32 %v265, %v305
      %v314 = vmul.f32 %v270, %v301
      %v315 = vmul.f32 %v270, %v305
      %v316 = vmul.f32 %v275, %v301
      %v317 = vmul.f32 %v275, %v305
      %v318 = vmul.f32 %v280, %v301
      %v319 = vmul.f32 %v280, %v305
      %v320 = vmul.f32 %v285, %v301
      %v321 = vmul.f32 %v285, %v305
      %322 = vset.pattern.permute.xlu0 4
      %323 = vperm.xlu0 %322, %v238
      %v324 = vpop.permute.xlu0 %323
      %326 = vset.pattern.permute.xlu0 4
      %327 = vperm.xlu0 %326, %v239
      %v328 = vpop.permute.xlu0 %327
      %330 = vset.pattern.permute.xlu0 4
      %331 = vperm.xlu0 %330, %v240
      %v332 = vpop.permute.xlu0 %331
      %334 = vset.pattern.permute.xlu0 4
      %335 = vperm.xlu0 %334, %v241
      %v336 = vpop.permute.xlu0 %335
      %338 = vset.pattern.permute.xlu0 4
      %339 = vperm.xlu0 %338, %v242
      %v340 = vpop.permute.xlu0 %339
      %342 = vset.pattern.permute.xlu0 4
      %343 = vperm.xlu0 %342, %v243
      %v344 = vpop.permute.xlu0 %343
      %346 = vset.pattern.permute.xlu0 4
      %347 = vperm.xlu0 %346, %v244
      %v348 = vpop.permute.xlu0 %347
      %350 = vset.pattern.permute.xlu0 4
      %351 = vperm.xlu0 %350, %v245
      %v352 = vpop.permute.xlu0 %351
      %v354 = vadd.f32 %v324, %v306
      %v355 = vadd.f32 %v324, %v307
      %v356 = vadd.f32 %v328, %v308
      %v357 = vadd.f32 %v328, %v309
      %v358 = vadd.f32 %v332, %v310
      %v359 = vadd.f32 %v332, %v311
      %v360 = vadd.f32 %v336, %v312
      %v361 = vadd.f32 %v336, %v313
      %v362 = vadd.f32 %v340, %v314
      %v363 = vadd.f32 %v340, %v315
      %v364 = vadd.f32 %v344, %v316
      %v365 = vadd.f32 %v344, %v317
      %v366 = vadd.f32 %v348, %v318
      %v367 = vadd.f32 %v348, %v319
      %v368 = vadd.f32 %v352, %v320
      %v369 = vadd.f32 %v352, %v321
      %370 = vset.pattern.permute.xlu0 1
      %371 = vperm.xlu0 %370, %v238
      %v372 = vpop.permute.xlu0 %371
      %374 = vset.pattern.permute.xlu0 1
      %375 = vperm.xlu0 %374, %v239
      %v376 = vpop.permute.xlu0 %375
      %378 = vset.pattern.permute.xlu0 1
      %379 = vperm.xlu0 %378, %v240
      %v380 = vpop.permute.xlu0 %379
      %382 = vset.pattern.permute.xlu0 1
      %383 = vperm.xlu0 %382, %v241
      %v384 = vpop.permute.xlu0 %383
      %386 = vset.pattern.permute.xlu0 1
      %387 = vperm.xlu0 %386, %v242
      %v388 = vpop.permute.xlu0 %387
      %390 = vset.pattern.permute.xlu0 1
      %391 = vperm.xlu0 %390, %v243
      %v392 = vpop.permute.xlu0 %391
      %394 = vset.pattern.permute.xlu0 1
      %395 = vperm.xlu0 %394, %v244
      %v396 = vpop.permute.xlu0 %395
      %398 = vset.pattern.permute.xlu0 1
      %399 = vperm.xlu0 %398, %v245
      %v400 = vpop.permute.xlu0 %399
      %v402 = vlaneseq
      %v403 = vshrl.u32 %v402, 7
      %v404 = vsub.s32 1, %v403
      %v405 = vrot.slane %v246, %v404
      %v406 = vlaneseq
      %v407 = vshrl.u32 %v406, 7
      %v408 = vsub.s32 5, %v407
      %v409 = vrot.slane %v246, %v408
      %v412 = vlaneseq
      %v413 = vshrl.u32 %v412, 7
      %v414 = vsub.s32 1, %v413
      %v415 = vrot.slane %v405, %v414
      %v416 = vlaneseq
      %v417 = vshrl.u32 %v416, 7
      %v418 = vsub.s32 1, %v417
      %v419 = vrot.slane %v409, %v418
      %v420 = vmul.f32 %v372, %v415
      %v421 = vmul.f32 %v372, %v419
      %v422 = vmul.f32 %v376, %v415
      %v423 = vmul.f32 %v376, %v419
      %v424 = vmul.f32 %v380, %v415
      %v425 = vmul.f32 %v380, %v419
      %v426 = vmul.f32 %v384, %v415
      %v427 = vmul.f32 %v384, %v419
      %v428 = vmul.f32 %v388, %v415
      %v429 = vmul.f32 %v388, %v419
      %v430 = vmul.f32 %v392, %v415
      %v431 = vmul.f32 %v392, %v419
      %v432 = vmul.f32 %v396, %v415
      %v433 = vmul.f32 %v396, %v419
      %v434 = vmul.f32 %v400, %v415
      %v435 = vmul.f32 %v400, %v419
      %v436 = vadd.f32 %v354, %v420
      %v437 = vadd.f32 %v355, %v421
      %v438 = vadd.f32 %v356, %v422
      %v439 = vadd.f32 %v357, %v423
      %v440 = vadd.f32 %v358, %v424
      %v441 = vadd.f32 %v359, %v425
      %v442 = vadd.f32 %v360, %v426
      %v443 = vadd.f32 %v361, %v427
      %v444 = vadd.f32 %v362, %v428
      %v445 = vadd.f32 %v363, %v429
      %v446 = vadd.f32 %v364, %v430
      %v447 = vadd.f32 %v365, %v431
      %v448 = vadd.f32 %v366, %v432
      %v449 = vadd.f32 %v367, %v433
      %v450 = vadd.f32 %v368, %v434
      %v451 = vadd.f32 %v369, %v435
      %452 = vset.pattern.permute.xlu0 2
      %453 = vperm.xlu0 %452, %v238
      %v454 = vpop.permute.xlu0 %453
      %456 = vset.pattern.permute.xlu0 2
      %457 = vperm.xlu0 %456, %v239
      %v458 = vpop.permute.xlu0 %457
      %460 = vset.pattern.permute.xlu0 2
      %461 = vperm.xlu0 %460, %v240
      %v462 = vpop.permute.xlu0 %461
      %464 = vset.pattern.permute.xlu0 2
      %465 = vperm.xlu0 %464, %v241
      %v466 = vpop.permute.xlu0 %465
      %468 = vset.pattern.permute.xlu0 2
      %469 = vperm.xlu0 %468, %v242
      %v470 = vpop.permute.xlu0 %469
      %472 = vset.pattern.permute.xlu0 2
      %473 = vperm.xlu0 %472, %v243
      %v474 = vpop.permute.xlu0 %473
      %476 = vset.pattern.permute.xlu0 2
      %477 = vperm.xlu0 %476, %v244
      %v478 = vpop.permute.xlu0 %477
      %480 = vset.pattern.permute.xlu0 2
      %481 = vperm.xlu0 %480, %v245
      %v482 = vpop.permute.xlu0 %481
      %v484 = vlaneseq
      %v485 = vshrl.u32 %v484, 7
      %v486 = vsub.s32 2, %v485
      %v487 = vrot.slane %v246, %v486
      %v488 = vlaneseq
      %v489 = vshrl.u32 %v488, 7
      %v490 = vsub.s32 6, %v489
      %v491 = vrot.slane %v246, %v490
      %v494 = vlaneseq
      %v495 = vshrl.u32 %v494, 7
      %v496 = vsub.s32 2, %v495
      %v497 = vrot.slane %v487, %v496
      %v498 = vlaneseq
      %v499 = vshrl.u32 %v498, 7
      %v500 = vsub.s32 2, %v499
      %v501 = vrot.slane %v491, %v500
      %v502 = vmul.f32 %v454, %v497
      %v503 = vmul.f32 %v454, %v501
      %v504 = vmul.f32 %v458, %v497
      %v505 = vmul.f32 %v458, %v501
      %v506 = vmul.f32 %v462, %v497
      %v507 = vmul.f32 %v462, %v501
      %v508 = vmul.f32 %v466, %v497
      %v509 = vmul.f32 %v466, %v501
      %v510 = vmul.f32 %v470, %v497
      %v511 = vmul.f32 %v470, %v501
      %v512 = vmul.f32 %v474, %v497
      %v513 = vmul.f32 %v474, %v501
      %v514 = vmul.f32 %v478, %v497
      %v515 = vmul.f32 %v478, %v501
      %v516 = vmul.f32 %v482, %v497
      %v517 = vmul.f32 %v482, %v501
      %v518 = vadd.f32 %v436, %v502
      %v519 = vadd.f32 %v437, %v503
      %v520 = vadd.f32 %v438, %v504
      %v521 = vadd.f32 %v439, %v505
      %v522 = vadd.f32 %v440, %v506
      %v523 = vadd.f32 %v441, %v507
      %v524 = vadd.f32 %v442, %v508
      %v525 = vadd.f32 %v443, %v509
      %v526 = vadd.f32 %v444, %v510
      %v527 = vadd.f32 %v445, %v511
      %v528 = vadd.f32 %v446, %v512
      %v529 = vadd.f32 %v447, %v513
      %v530 = vadd.f32 %v448, %v514
      %v531 = vadd.f32 %v449, %v515
      %v532 = vadd.f32 %v450, %v516
      %v533 = vadd.f32 %v451, %v517
      %534 = vset.pattern.permute.xlu0 3
      %535 = vperm.xlu0 %534, %v238
      %v536 = vpop.permute.xlu0 %535
      %538 = vset.pattern.permute.xlu0 3
      %539 = vperm.xlu0 %538, %v239
      %v540 = vpop.permute.xlu0 %539
      %542 = vset.pattern.permute.xlu0 3
      %543 = vperm.xlu0 %542, %v240
      %v544 = vpop.permute.xlu0 %543
      %546 = vset.pattern.permute.xlu0 3
      %547 = vperm.xlu0 %546, %v241
      %v548 = vpop.permute.xlu0 %547
      %550 = vset.pattern.permute.xlu0 3
      %551 = vperm.xlu0 %550, %v242
      %v552 = vpop.permute.xlu0 %551
      %554 = vset.pattern.permute.xlu0 3
      %555 = vperm.xlu0 %554, %v243
      %v556 = vpop.permute.xlu0 %555
      %558 = vset.pattern.permute.xlu0 3
      %559 = vperm.xlu0 %558, %v244
      %v560 = vpop.permute.xlu0 %559
      %562 = vset.pattern.permute.xlu0 3
      %563 = vperm.xlu0 %562, %v245
      %v564 = vpop.permute.xlu0 %563
      %v566 = vlaneseq
      %v567 = vshrl.u32 %v566, 7
      %v568 = vsub.s32 3, %v567
      %v569 = vrot.slane %v246, %v568
      %v570 = vlaneseq
      %v571 = vshrl.u32 %v570, 7
      %v572 = vsub.s32 7, %v571
      %v573 = vrot.slane %v246, %v572
      %v576 = vlaneseq
      %v577 = vshrl.u32 %v576, 7
      %v578 = vsub.s32 3, %v577
      %v579 = vrot.slane %v569, %v578
      %v580 = vlaneseq
      %v581 = vshrl.u32 %v580, 7
      %v582 = vsub.s32 3, %v581
      %v583 = vrot.slane %v573, %v582
      %v584 = vmul.f32 %v536, %v579
      %v585 = vmul.f32 %v536, %v583
      %v586 = vmul.f32 %v540, %v579
      %v587 = vmul.f32 %v540, %v583
      %v588 = vmul.f32 %v544, %v579
      %v589 = vmul.f32 %v544, %v583
      %v590 = vmul.f32 %v548, %v579
      %v591 = vmul.f32 %v548, %v583
      %v592 = vmul.f32 %v552, %v579
      %v593 = vmul.f32 %v552, %v583
      %v594 = vmul.f32 %v556, %v579
      %v595 = vmul.f32 %v556, %v583
      %v596 = vmul.f32 %v560, %v579
      %v597 = vmul.f32 %v560, %v583
      %v598 = vmul.f32 %v564, %v579
      %v599 = vmul.f32 %v564, %v583
      %v600 = vadd.f32 %v518, %v584
      %v601 = vadd.f32 %v519, %v585
      %v602 = vadd.f32 %v520, %v586
      %v603 = vadd.f32 %v521, %v587
      %v604 = vadd.f32 %v522, %v588
      %v605 = vadd.f32 %v523, %v589
      %v606 = vadd.f32 %v524, %v590
      %v607 = vadd.f32 %v525, %v591
      %v608 = vadd.f32 %v526, %v592
      %v609 = vadd.f32 %v527, %v593
      %v610 = vadd.f32 %v528, %v594
      %v611 = vadd.f32 %v529, %v595
      %v612 = vadd.f32 %v530, %v596
      %v613 = vadd.f32 %v531, %v597
      %v614 = vadd.f32 %v532, %v598
      %v615 = vadd.f32 %v533, %v599
      %v616 = vmax.f32 %v600, 0.0
      %v617 = vmax.f32 %v601, 0.0
      %v618 = vmax.f32 %v602, 0.0
      %v619 = vmax.f32 %v603, 0.0
      %v620 = vmax.f32 %v604, 0.0
      %v621 = vmax.f32 %v605, 0.0
      %v622 = vmax.f32 %v606, 0.0
      %v623 = vmax.f32 %v607, 0.0
      %v624 = vmax.f32 %v608, 0.0
      %v625 = vmax.f32 %v609, 0.0
      %v626 = vmax.f32 %v610, 0.0
      %v627 = vmax.f32 %v611, 0.0
      %v628 = vmax.f32 %v612, 0.0
      %v629 = vmax.f32 %v613, 0.0
      %v630 = vmax.f32 %v614, 0.0
      %v631 = vmax.f32 %v615, 0.0
      %v632 = vadd.f32 %v616, %v617
      %633 = vadd.xlane.f32.xlu0 %v632
      %v634 = vpop.xlane.xlu0 %633
      %v635 = vadd.f32 %v618, %v619
      %636 = vadd.xlane.f32.xlu0 %v635
      %v637 = vpop.xlane.xlu0 %636
      %v638 = vadd.f32 %v620, %v621
      %639 = vadd.xlane.f32.xlu0 %v638
      %v640 = vpop.xlane.xlu0 %639
      %v641 = vadd.f32 %v622, %v623
      %642 = vadd.xlane.f32.xlu0 %v641
      %v643 = vpop.xlane.xlu0 %642
      %v644 = vadd.f32 %v624, %v625
      %645 = vadd.xlane.f32.xlu0 %v644
      %v646 = vpop.xlane.xlu0 %645
      %v647 = vadd.f32 %v626, %v627
      %648 = vadd.xlane.f32.xlu0 %v647
      %v649 = vpop.xlane.xlu0 %648
      %v650 = vadd.f32 %v628, %v629
      %651 = vadd.xlane.f32.xlu0 %v650
      %v652 = vpop.xlane.xlu0 %651
      %v653 = vadd.f32 %v630, %v631
      %654 = vadd.xlane.f32.xlu0 %v653
      %v655 = vpop.xlane.xlu0 %654
      %v656 = vadd.f32 %v634, 0.0
      %v657 = vadd.f32 %v637, 0.0
      %v658 = vadd.f32 %v640, 0.0
      %v659 = vadd.f32 %v643, 0.0
      %v660 = vadd.f32 %v646, 0.0
      %v661 = vadd.f32 %v649, 0.0
      %v662 = vadd.f32 %v652, 0.0
      %v663 = vadd.f32 %v655, 0.0
      %v664 = vld [vmem:[#allocation2] sm:$0xff]
      %v665 = vld [vmem:[#allocation2 + $0x8] sm:$0xff]
      %v666 = vld [vmem:[#allocation2 + $0x10] sm:$0xff]
      %v667 = vld [vmem:[#allocation2 + $0x18] sm:$0xff]
      %v668 = vld [vmem:[#allocation2 + $0x20] sm:$0xff]
      %v669 = vld [vmem:[#allocation2 + $0x28] sm:$0xff]
      %v670 = vld [vmem:[#allocation2 + $0x30] sm:$0xff]
      %v671 = vld [vmem:[#allocation2 + $0x38] sm:$0xff]
      %v672 = vadd.f32 %v664, %v656
      %v673 = vadd.f32 %v665, %v657
      %v674 = vadd.f32 %v666, %v658
      %v675 = vadd.f32 %v667, %v659
      %v676 = vadd.f32 %v668, %v660
      %v677 = vadd.f32 %v669, %v661
      %v678 = vadd.f32 %v670, %v662
      %v679 = vadd.f32 %v671, %v663
      %vm680 = vcmask 7168
      %681 = vst.msk [vmem:[#allocation2] sm:$0xff] %vm680, %v672
      %682 = vst.msk [vmem:[#allocation2 + $0x8] sm:$0xff] %vm680, %v673
      %683 = vst.msk [vmem:[#allocation2 + $0x10] sm:$0xff] %vm680, %v674
      %684 = vst.msk [vmem:[#allocation2 + $0x18] sm:$0xff] %vm680, %v675
      %685 = vst.msk [vmem:[#allocation2 + $0x20] sm:$0xff] %vm680, %v676
      %686 = vst.msk [vmem:[#allocation2 + $0x28] sm:$0xff] %vm680, %v677
      %687 = vst.msk [vmem:[#allocation2 + $0x30] sm:$0xff] %vm680, %v678
      %688 = vst.msk [vmem:[#allocation2 + $0x38] sm:$0xff] %vm680, %v679
      // Predicated region
      $region41: #{tpu_custom_call.1} parent=35 // pred_check
        %p689 = pneg %p226
      $region42: #{tpu_custom_call.1} parent=35 // pred_check_branch
        %691 = sbr.rel (%p689) target = $region44
      $region43: #{tpu_custom_call.1} parent=35 // pred_region
        %v692 = vld [vmem:[#allocation2] sm:$0xff]
        %v693 = vld [vmem:[#allocation2 + $0x8] sm:$0xff]
        %v694 = vld [vmem:[#allocation2 + $0x10] sm:$0xff]
        %v695 = vld [vmem:[#allocation2 + $0x18] sm:$0xff]
        %v696 = vld [vmem:[#allocation2 + $0x20] sm:$0xff]
        %v697 = vld [vmem:[#allocation2 + $0x28] sm:$0xff]
        %v698 = vld [vmem:[#allocation2 + $0x30] sm:$0xff]
        %v699 = vld [vmem:[#allocation2 + $0x38] sm:$0xff]
        %v700 = vld [vmem:[%s1] sm:$0xff]
        %v701 = vld [vmem:[%s1 + $0x8] sm:$0xff]
        %v702 = vld [vmem:[%s1 + $0x10] sm:$0xff]
        %v703 = vld [vmem:[%s1 + $0x18] sm:$0xff]
        %v704 = vld [vmem:[%s1 + $0x20] sm:$0xff]
        %v705 = vld [vmem:[%s1 + $0x28] sm:$0xff]
        %v706 = vld [vmem:[%s1 + $0x30] sm:$0xff]
        %v707 = vld [vmem:[%s1 + $0x38] sm:$0xff]
        %709 = vset.pattern.permute.xlu0 5
        %710 = vperm.xlu0 %709, %v700
        %v711 = vpop.permute.xlu0 %710
        %714 = vset.pattern.permute.xlu0 5
        %715 = vperm.xlu0 %714, %v701
        %v716 = vpop.permute.xlu0 %715
        %719 = vset.pattern.permute.xlu0 5
        %720 = vperm.xlu0 %719, %v702
        %v721 = vpop.permute.xlu0 %720
        %724 = vset.pattern.permute.xlu0 5
        %725 = vperm.xlu0 %724, %v703
        %v726 = vpop.permute.xlu0 %725
        %729 = vset.pattern.permute.xlu0 5
        %730 = vperm.xlu0 %729, %v704
        %v731 = vpop.permute.xlu0 %730
        %734 = vset.pattern.permute.xlu0 5
        %735 = vperm.xlu0 %734, %v705
        %v736 = vpop.permute.xlu0 %735
        %739 = vset.pattern.permute.xlu0 5
        %740 = vperm.xlu0 %739, %v706
        %v741 = vpop.permute.xlu0 %740
        %744 = vset.pattern.permute.xlu0 5
        %745 = vperm.xlu0 %744, %v707
        %v746 = vpop.permute.xlu0 %745
        %v748 = vmul.f32 %v692, %v711
        %v749 = vmul.f32 %v693, %v716
        %v750 = vmul.f32 %v694, %v721
        %v751 = vmul.f32 %v695, %v726
        %v752 = vmul.f32 %v696, %v731
        %v753 = vmul.f32 %v697, %v736
        %v754 = vmul.f32 %v698, %v741
        %v755 = vmul.f32 %v699, %v746
        %756 = vset.pattern.permute.xlu0 6
        %757 = vperm.xlu0 %756, %v700
        %v758 = vpop.permute.xlu0 %757
        %760 = vset.pattern.permute.xlu0 6
        %761 = vperm.xlu0 %760, %v701
        %v762 = vpop.permute.xlu0 %761
        %764 = vset.pattern.permute.xlu0 6
        %765 = vperm.xlu0 %764, %v702
        %v766 = vpop.permute.xlu0 %765
        %768 = vset.pattern.permute.xlu0 6
        %769 = vperm.xlu0 %768, %v703
        %v770 = vpop.permute.xlu0 %769
        %772 = vset.pattern.permute.xlu0 6
        %773 = vperm.xlu0 %772, %v704
        %v774 = vpop.permute.xlu0 %773
        %776 = vset.pattern.permute.xlu0 6
        %777 = vperm.xlu0 %776, %v705
        %v778 = vpop.permute.xlu0 %777
        %780 = vset.pattern.permute.xlu0 6
        %781 = vperm.xlu0 %780, %v706
        %v782 = vpop.permute.xlu0 %781
        %784 = vset.pattern.permute.xlu0 6
        %785 = vperm.xlu0 %784, %v707
        %v786 = vpop.permute.xlu0 %785
        %v788 = vadd.f32 %v748, %v758
        %v789 = vadd.f32 %v749, %v762
        %v790 = vadd.f32 %v750, %v766
        %v791 = vadd.f32 %v751, %v770
        %v792 = vadd.f32 %v752, %v774
        %v793 = vadd.f32 %v753, %v778
        %v794 = vadd.f32 %v754, %v782
        %v795 = vadd.f32 %v755, %v786
        %v796 = vmax.f32 %v788, 0.0
        %v797 = vmax.f32 %v789, 0.0
        %v798 = vmax.f32 %v790, 0.0
        %v799 = vmax.f32 %v791, 0.0
        %v800 = vmax.f32 %v792, 0.0
        %v801 = vmax.f32 %v793, 0.0
        %v802 = vmax.f32 %v794, 0.0
        %v803 = vmax.f32 %v795, 0.0
        %v804 = vld [vmem:[%s2] sm:$0xff]
        %v805 = vld [vmem:[%s2 + $0x8] sm:$0xff]
        %v806 = vld [vmem:[%s2 + $0x10] sm:$0xff]
        %v807 = vld [vmem:[%s2 + $0x18] sm:$0xff]
        %v808 = vld [vmem:[%s2 + $0x20] sm:$0xff]
        %v809 = vld [vmem:[%s2 + $0x28] sm:$0xff]
        %v810 = vld [vmem:[%s2 + $0x30] sm:$0xff]
        %v811 = vld [vmem:[%s2 + $0x38] sm:$0xff]
        %v812 = vld [vmem:[%s2 + $0x40] sm:$0xff]
        %v813 = vld [vmem:[%s2 + $0x48] sm:$0xff]
        %v814 = vld [vmem:[%s2 + $0x50] sm:$0xff]
        %v815 = vld [vmem:[%s2 + $0x58] sm:$0xff]
        %v816 = vld [vmem:[%s2 + $0x60] sm:$0xff]
        %v817 = vld [vmem:[%s2 + $0x68] sm:$0xff]
        %v818 = vld [vmem:[%s2 + $0x70] sm:$0xff]
        %v819 = vld [vmem:[%s2 + $0x78] sm:$0xff]
        %v820 = vld [vmem:[%s2 + $0x80] sm:$0xff]
        %v821 = vld [vmem:[%s2 + $0x88] sm:$0xff]
        %v822 = vld [vmem:[%s2 + $0x90] sm:$0xff]
        %v823 = vld [vmem:[%s2 + $0x98] sm:$0xff]
        %v824 = vld [vmem:[%s2 + $0xa0] sm:$0xff]
        %v825 = vld [vmem:[%s2 + $0xa8] sm:$0xff]
        %v826 = vld [vmem:[%s2 + $0xb0] sm:$0xff]
        %v827 = vld [vmem:[%s2 + $0xb8] sm:$0xff]
        %v828 = vld [vmem:[%s2 + $0xc0] sm:$0xff]
        %v829 = vld [vmem:[%s2 + $0xc8] sm:$0xff]
        %v830 = vld [vmem:[%s2 + $0xd0] sm:$0xff]
        %v831 = vld [vmem:[%s2 + $0xd8] sm:$0xff]
        %v832 = vld [vmem:[%s2 + $0xe0] sm:$0xff]
        %v833 = vld [vmem:[%s2 + $0xe8] sm:$0xff]
        %v834 = vld [vmem:[%s2 + $0xf0] sm:$0xff]
        %v835 = vld [vmem:[%s2 + $0xf8] sm:$0xff]
        %v836 = vld [vmem:[%s2 + $0x100] sm:$0xff]
        %v837 = vld [vmem:[%s2 + $0x108] sm:$0xff]
        %v838 = vld [vmem:[%s2 + $0x110] sm:$0xff]
        %v839 = vld [vmem:[%s2 + $0x118] sm:$0xff]
        %v840 = vld [vmem:[%s2 + $0x120] sm:$0xff]
        %v841 = vld [vmem:[%s2 + $0x128] sm:$0xff]
        %v842 = vld [vmem:[%s2 + $0x130] sm:$0xff]
        %v843 = vld [vmem:[%s2 + $0x138] sm:$0xff]
        %v844 = vld [vmem:[%s2 + $0x140] sm:$0xff]
        %v845 = vld [vmem:[%s2 + $0x148] sm:$0xff]
        %v846 = vld [vmem:[%s2 + $0x150] sm:$0xff]
        %v847 = vld [vmem:[%s2 + $0x158] sm:$0xff]
        %v848 = vld [vmem:[%s2 + $0x160] sm:$0xff]
        %v849 = vld [vmem:[%s2 + $0x168] sm:$0xff]
        %v850 = vld [vmem:[%s2 + $0x170] sm:$0xff]
        %v851 = vld [vmem:[%s2 + $0x178] sm:$0xff]
        %v852 = vld [vmem:[%s2 + $0x180] sm:$0xff]
        %v853 = vld [vmem:[%s2 + $0x188] sm:$0xff]
        %v854 = vld [vmem:[%s2 + $0x190] sm:$0xff]
        %v855 = vld [vmem:[%s2 + $0x198] sm:$0xff]
        %v856 = vld [vmem:[%s2 + $0x1a0] sm:$0xff]
        %v857 = vld [vmem:[%s2 + $0x1a8] sm:$0xff]
        %v858 = vld [vmem:[%s2 + $0x1b0] sm:$0xff]
        %v859 = vld [vmem:[%s2 + $0x1b8] sm:$0xff]
        %v860 = vld [vmem:[%s2 + $0x1c0] sm:$0xff]
        %v861 = vld [vmem:[%s2 + $0x1c8] sm:$0xff]
        %v862 = vld [vmem:[%s2 + $0x1d0] sm:$0xff]
        %v863 = vld [vmem:[%s2 + $0x1d8] sm:$0xff]
        %v864 = vld [vmem:[%s2 + $0x1e0] sm:$0xff]
        %v865 = vld [vmem:[%s2 + $0x1e8] sm:$0xff]
        %v866 = vld [vmem:[%s2 + $0x1f0] sm:$0xff]
        %v867 = vld [vmem:[%s2 + $0x1f8] sm:$0xff]
        %vm868 = vcmask 523264
        %v870 = vsel %vm868, %v804, 0
        %v873 = vsel %vm868, %v805, 0
        %v876 = vsel %vm868, %v806, 0
        %v879 = vsel %vm868, %v807, 0
        %v882 = vsel %vm868, %v808, 0
        %v885 = vsel %vm868, %v809, 0
        %v888 = vsel %vm868, %v810, 0
        %v891 = vsel %vm868, %v811, 0
        %v894 = vsel %vm868, %v812, 0
        %v897 = vsel %vm868, %v813, 0
        %v900 = vsel %vm868, %v814, 0
        %v903 = vsel %vm868, %v815, 0
        %v906 = vsel %vm868, %v816, 0
        %v909 = vsel %vm868, %v817, 0
        %v912 = vsel %vm868, %v818, 0
        %v915 = vsel %vm868, %v819, 0
        %v918 = vsel %vm868, %v820, 0
        %v921 = vsel %vm868, %v821, 0
        %v924 = vsel %vm868, %v822, 0
        %v927 = vsel %vm868, %v823, 0
        %v930 = vsel %vm868, %v824, 0
        %v933 = vsel %vm868, %v825, 0
        %v936 = vsel %vm868, %v826, 0
        %v939 = vsel %vm868, %v827, 0
        %v942 = vsel %vm868, %v828, 0
        %v945 = vsel %vm868, %v829, 0
        %v948 = vsel %vm868, %v830, 0
        %v951 = vsel %vm868, %v831, 0
        %v954 = vsel %vm868, %v832, 0
        %v957 = vsel %vm868, %v833, 0
        %v960 = vsel %vm868, %v834, 0
        %v963 = vsel %vm868, %v835, 0
        %v966 = vsel %vm868, %v836, 0
        %v969 = vsel %vm868, %v837, 0
        %v972 = vsel %vm868, %v838, 0
        %v975 = vsel %vm868, %v839, 0
        %v978 = vsel %vm868, %v840, 0
        %v981 = vsel %vm868, %v841, 0
        %v984 = vsel %vm868, %v842, 0
        %v987 = vsel %vm868, %v843, 0
        %v990 = vsel %vm868, %v844, 0
        %v993 = vsel %vm868, %v845, 0
        %v996 = vsel %vm868, %v846, 0
        %v999 = vsel %vm868, %v847, 0
        %v1002 = vsel %vm868, %v848, 0
        %v1005 = vsel %vm868, %v849, 0
        %v1008 = vsel %vm868, %v850, 0
        %v1011 = vsel %vm868, %v851, 0
        %v1014 = vsel %vm868, %v852, 0
        %v1017 = vsel %vm868, %v853, 0
        %v1020 = vsel %vm868, %v854, 0
        %v1023 = vsel %vm868, %v855, 0
        %v1026 = vsel %vm868, %v856, 0
        %v1029 = vsel %vm868, %v857, 0
        %v1032 = vsel %vm868, %v858, 0
        %v1035 = vsel %vm868, %v859, 0
        %v1038 = vsel %vm868, %v860, 0
        %v1041 = vsel %vm868, %v861, 0
        %v1044 = vsel %vm868, %v862, 0
        %v1047 = vsel %vm868, %v863, 0
        %v1050 = vsel %vm868, %v864, 0
        %v1053 = vsel %vm868, %v865, 0
        %v1056 = vsel %vm868, %v866, 0
        %v1059 = vsel %vm868, %v867, 0
        %1061 = vmatprep.subr.mxu0 0.0
        %1062 = vmatpush1.msra.mxu0 %v796
        %1063 = vmatprep.subr.mxu0 0.0
        %1064 = vmatpush1.msra.mxu0 %v797
        %1065 = vmatprep.subr.mxu0 0.0
        %1066 = vmatpush1.msra.mxu0 %v798
        %1067 = vmatprep.subr.mxu0 0.0
        %1068 = vmatpush1.msra.mxu0 %v799
        %1069 = vmatprep.subr.mxu0 0.0
        %1070 = vmatpush1.msra.mxu0 %v800
        %1071 = vmatprep.subr.mxu0 0.0
        %1072 = vmatpush1.msra.mxu0 %v801
        %1073 = vmatprep.subr.mxu0 0.0
        %1074 = vmatpush1.msra.mxu0 %v802
        %1075 = vmatprep.subr.mxu0 0.0
        %1076 = vmatpush1.msra.mxu0 %v803
        %1077 = vmatprep.subr.mxu0 0.0
        %1078 = vmatpush1.msra.mxu0 0.0
        %1079 = vmatprep.subr.mxu0 0.0
        %1080 = vmatpush1.msra.mxu0 0.0
        %1081 = vmatprep.subr.mxu0 0.0
        %1082 = vmatpush1.msra.mxu0 0.0
        %1083 = vmatprep.subr.mxu0 0.0
        %1084 = vmatpush1.msra.mxu0 0.0
        %1085 = vmatprep.subr.mxu0 0.0
        %1086 = vmatpush1.msra.mxu0 0.0
        %1087 = vmatprep.subr.mxu0 0.0
        %1088 = vmatpush1.msra.mxu0 0.0
        %1089 = vmatprep.subr.mxu0 0.0
        %1090 = vmatpush1.msra.mxu0 0.0
        %1091 = vmatprep.subr.mxu0 0.0
        %1092 = vmatpush1.msra.mxu0 0.0
        %1093 = vmatprep.subr.mxu0 0.0
        %1094 = vmatpush1.msra.mxu0 0.0
        %1095 = vmatprep.subr.mxu0 0.0
        %1096 = vmatpush1.msra.mxu0 0.0
        %1097 = vmatprep.subr.mxu0 0.0
        %1098 = vmatpush1.msra.mxu0 0.0
        %1099 = vmatprep.subr.mxu0 0.0
        %1100 = vmatpush1.msra.mxu0 0.0
        %1101 = vmatprep.subr.mxu0 0.0
        %1102 = vmatpush1.msra.mxu0 0.0
        %1103 = vmatprep.subr.mxu0 0.0
        %1104 = vmatpush1.msra.mxu0 0.0
        %1105 = vmatprep.subr.mxu0 0.0
        %1106 = vmatpush1.msra.mxu0 0.0
        %1107 = vmatprep.subr.mxu0 0.0
        %1108 = vmatpush1.msra.mxu0 0.0
        %1109 = vmatprep.subr.mxu0 0.0
        %1110 = vmatpush1.msra.mxu0 0.0
        %1111 = vmatprep.subr.mxu0 0.0
        %1112 = vmatpush1.msra.mxu0 0.0
        %1113 = vmatprep.subr.mxu0 0.0
        %1114 = vmatpush1.msra.mxu0 0.0
        %1115 = vmatprep.subr.mxu0 0.0
        %1116 = vmatpush1.msra.mxu0 0.0
        %1117 = vmatprep.subr.mxu0 0.0
        %1118 = vmatpush1.msra.mxu0 0.0
        %1119 = vmatprep.subr.mxu0 0.0
        %1120 = vmatpush1.msra.mxu0 0.0
        %1121 = vmatprep.subr.mxu0 0.0
        %1122 = vmatpush1.msra.mxu0 0.0
        %1123 = vmatprep.subr.mxu0 0.0
        %1124 = vmatpush1.msra.mxu0 0.0
        %1125 = vmatprep.mubr.f32.mxu0 0.0
        %1126 = vmatmul.mubr.f32.gmra.mrb[0].mxu0 %v870
        %v1127 = vpop.f32.mrb[0].mxu0
        %v1128 = vadd.f32 0.0, %v1127
        %v1129 = vpop.f32.mrb[0].mxu0
        %1130 = vmatprep.mubr.f32.mxu0 0.0
        %1131 = vmatmul.mubr.f32.gmra.mrb[0].mxu0 %v873
        %v1132 = vpop.f32.mrb[0].mxu0
        %v1133 = vadd.f32 0.0, %v1132
        %v1134 = vpop.f32.mrb[0].mxu0
        %1135 = vmatprep.mubr.f32.mxu0 0.0
        %1136 = vmatmul.mubr.f32.gmra.mrb[0].mxu0 %v876
        %v1137 = vpop.f32.mrb[0].mxu0
        %v1138 = vadd.f32 0.0, %v1137
        %v1139 = vpop.f32.mrb[0].mxu0
        %1140 = vmatprep.mubr.f32.mxu0 0.0
        %1141 = vmatmul.mubr.f32.gmra.mrb[0].mxu0 %v879
        %v1142 = vpop.f32.mrb[0].mxu0
        %v1143 = vadd.f32 0.0, %v1142
        %v1144 = vpop.f32.mrb[0].mxu0
        %1145 = vmatprep.mubr.f32.mxu0 0.0
        %1146 = vmatmul.mubr.f32.gmra.mrb[0].mxu0 %v882
        %v1147 = vpop.f32.mrb[0].mxu0
        %v1148 = vadd.f32 0.0, %v1147
        %v1149 = vpop.f32.mrb[0].mxu0
        %1150 = vmatprep.mubr.f32.mxu0 0.0
        %1151 = vmatmul.mubr.f32.gmra.mrb[0].mxu0 %v885
        %v1152 = vpop.f32.mrb[0].mxu0
        %v1153 = vadd.f32 0.0, %v1152
        %v1154 = vpop.f32.mrb[0].mxu0
        %1155 = vmatprep.mubr.f32.mxu0 0.0
        %1156 = vmatmul.mubr.f32.gmra.mrb[0].mxu0 %v888
        %v1157 = vpop.f32.mrb[0].mxu0
        %v1158 = vadd.f32 0.0, %v1157
        %v1159 = vpop.f32.mrb[0].mxu0
        %1160 = vmatprep.mubr.f32.mxu0 0.0
        %1161 = vmatmul.mubr.f32.gmra.mrb[0].mxu0 %v891
        %v1162 = vpop.f32.mrb[0].mxu0
        %v1163 = vadd.f32 0.0, %v1162
        %v1164 = vpop.f32.mrb[0].mxu0
        %1165 = vmatprep.mubr.f32.mxu0 0.0
        %1166 = vmatmul.mubr.f32.gmra.mrb[0].mxu0 %v894
        %v1167 = vpop.f32.mrb[0].mxu0
        %v1168 = vadd.f32 0.0, %v1167
        %v1169 = vpop.f32.mrb[0].mxu0
        %1170 = vmatprep.mubr.f32.mxu0 0.0
        %1171 = vmatmul.mubr.f32.gmra.mrb[0].mxu0 %v897
        %v1172 = vpop.f32.mrb[0].mxu0
        %v1173 = vadd.f32 0.0, %v1172
        %v1174 = vpop.f32.mrb[0].mxu0
        %1175 = vmatprep.mubr.f32.mxu0 0.0
        %1176 = vmatmul.mubr.f32.gmra.mrb[0].mxu0 %v900
        %v1177 = vpop.f32.mrb[0].mxu0
        %v1178 = vadd.f32 0.0, %v1177
        %v1179 = vpop.f32.mrb[0].mxu0
        %1180 = vmatprep.mubr.f32.mxu0 0.0
        %1181 = vmatmul.mubr.f32.gmra.mrb[0].mxu0 %v903
        %v1182 = vpop.f32.mrb[0].mxu0
        %v1183 = vadd.f32 0.0, %v1182
        %v1184 = vpop.f32.mrb[0].mxu0
        %1185 = vmatprep.mubr.f32.mxu0 0.0
        %1186 = vmatmul.mubr.f32.gmra.mrb[0].mxu0 %v906
        %v1187 = vpop.f32.mrb[0].mxu0
        %v1188 = vadd.f32 0.0, %v1187
        %v1189 = vpop.f32.mrb[0].mxu0
        %1190 = vmatprep.mubr.f32.mxu0 0.0
        %1191 = vmatmul.mubr.f32.gmra.mrb[0].mxu0 %v909
        %v1192 = vpop.f32.mrb[0].mxu0
        %v1193 = vadd.f32 0.0, %v1192
        %v1194 = vpop.f32.mrb[0].mxu0
        %1195 = vmatprep.mubr.f32.mxu0 0.0
        %1196 = vmatmul.mubr.f32.gmra.mrb[0].mxu0 %v912
        %v1197 = vpop.f32.mrb[0].mxu0
        %v1198 = vadd.f32 0.0, %v1197
        %v1199 = vpop.f32.mrb[0].mxu0
        %1200 = vmatprep.mubr.f32.mxu0 0.0
        %1201 = vmatmul.mubr.f32.gmra.mrb[0].mxu0 %v915
        %v1202 = vpop.f32.mrb[0].mxu0
        %v1203 = vadd.f32 0.0, %v1202
        %v1204 = vpop.f32.mrb[0].mxu0
        %1205 = vmatprep.mubr.f32.mxu0 0.0
        %1206 = vmatmul.mubr.f32.gmra.mrb[0].mxu0 %v918
        %v1207 = vpop.f32.mrb[0].mxu0
        %v1208 = vadd.f32 0.0, %v1207
        %v1209 = vpop.f32.mrb[0].mxu0
        %1210 = vmatprep.mubr.f32.mxu0 0.0
        %1211 = vmatmul.mubr.f32.gmra.mrb[0].mxu0 %v921
        %v1212 = vpop.f32.mrb[0].mxu0
        %v1213 = vadd.f32 0.0, %v1212
        %v1214 = vpop.f32.mrb[0].mxu0
        %1215 = vmatprep.mubr.f32.mxu0 0.0
        %1216 = vmatmul.mubr.f32.gmra.mrb[0].mxu0 %v924
        %v1217 = vpop.f32.mrb[0].mxu0
        %v1218 = vadd.f32 0.0, %v1217
        %v1219 = vpop.f32.mrb[0].mxu0
        %1220 = vmatprep.mubr.f32.mxu0 0.0
        %1221 = vmatmul.mubr.f32.gmra.mrb[0].mxu0 %v927
        %v1222 = vpop.f32.mrb[0].mxu0
        %v1223 = vadd.f32 0.0, %v1222
        %v1224 = vpop.f32.mrb[0].mxu0
        %1225 = vmatprep.mubr.f32.mxu0 0.0
        %1226 = vmatmul.mubr.f32.gmra.mrb[0].mxu0 %v930
        %v1227 = vpop.f32.mrb[0].mxu0
        %v1228 = vadd.f32 0.0, %v1227
        %v1229 = vpop.f32.mrb[0].mxu0
        %1230 = vmatprep.mubr.f32.mxu0 0.0
        %1231 = vmatmul.mubr.f32.gmra.mrb[0].mxu0 %v933
        %v1232 = vpop.f32.mrb[0].mxu0
        %v1233 = vadd.f32 0.0, %v1232
        %v1234 = vpop.f32.mrb[0].mxu0
        %1235 = vmatprep.mubr.f32.mxu0 0.0
        %1236 = vmatmul.mubr.f32.gmra.mrb[0].mxu0 %v936
        %v1237 = vpop.f32.mrb[0].mxu0
        %v1238 = vadd.f32 0.0, %v1237
        %v1239 = vpop.f32.mrb[0].mxu0
        %1240 = vmatprep.mubr.f32.mxu0 0.0
        %1241 = vmatmul.mubr.f32.gmra.mrb[0].mxu0 %v939
        %v1242 = vpop.f32.mrb[0].mxu0
        %v1243 = vadd.f32 0.0, %v1242
        %v1244 = vpop.f32.mrb[0].mxu0
        %1245 = vmatprep.mubr.f32.mxu0 0.0
        %1246 = vmatmul.mubr.f32.gmra.mrb[0].mxu0 %v942
        %v1247 = vpop.f32.mrb[0].mxu0
        %v1248 = vadd.f32 0.0, %v1247
        %v1249 = vpop.f32.mrb[0].mxu0
        %1250 = vmatprep.mubr.f32.mxu0 0.0
        %1251 = vmatmul.mubr.f32.gmra.mrb[0].mxu0 %v945
        %v1252 = vpop.f32.mrb[0].mxu0
        %v1253 = vadd.f32 0.0, %v1252
        %v1254 = vpop.f32.mrb[0].mxu0
        %1255 = vmatprep.mubr.f32.mxu0 0.0
        %1256 = vmatmul.mubr.f32.gmra.mrb[0].mxu0 %v948
        %v1257 = vpop.f32.mrb[0].mxu0
        %v1258 = vadd.f32 0.0, %v1257
        %v1259 = vpop.f32.mrb[0].mxu0
        %1260 = vmatprep.mubr.f32.mxu0 0.0
        %1261 = vmatmul.mubr.f32.gmra.mrb[0].mxu0 %v951
        %v1262 = vpop.f32.mrb[0].mxu0
        %v1263 = vadd.f32 0.0, %v1262
        %v1264 = vpop.f32.mrb[0].mxu0
        %1265 = vmatprep.mubr.f32.mxu0 0.0
        %1266 = vmatmul.mubr.f32.gmra.mrb[0].mxu0 %v954
        %v1267 = vpop.f32.mrb[0].mxu0
        %v1268 = vadd.f32 0.0, %v1267
        %v1269 = vpop.f32.mrb[0].mxu0
        %1270 = vmatprep.mubr.f32.mxu0 0.0
        %1271 = vmatmul.mubr.f32.gmra.mrb[0].mxu0 %v957
        %v1272 = vpop.f32.mrb[0].mxu0
        %v1273 = vadd.f32 0.0, %v1272
        %v1274 = vpop.f32.mrb[0].mxu0
        %1275 = vmatprep.mubr.f32.mxu0 0.0
        %1276 = vmatmul.mubr.f32.gmra.mrb[0].mxu0 %v960
        %v1277 = vpop.f32.mrb[0].mxu0
        %v1278 = vadd.f32 0.0, %v1277
        %v1279 = vpop.f32.mrb[0].mxu0
        %1280 = vmatprep.mubr.f32.mxu0 0.0
        %1281 = vmatmul.mubr.f32.gmra.mrb[0].mxu0 %v963
        %v1282 = vpop.f32.mrb[0].mxu0
        %v1283 = vadd.f32 0.0, %v1282
        %v1284 = vpop.f32.mrb[0].mxu0
        %1285 = vmatprep.mubr.f32.mxu0 0.0
        %1286 = vmatmul.mubr.f32.gmra.mrb[0].mxu0 %v966
        %v1287 = vpop.f32.mrb[0].mxu0
        %v1288 = vadd.f32 0.0, %v1287
        %v1289 = vpop.f32.mrb[0].mxu0
        %1290 = vmatprep.mubr.f32.mxu0 0.0
        %1291 = vmatmul.mubr.f32.gmra.mrb[0].mxu0 %v969
        %v1292 = vpop.f32.mrb[0].mxu0
        %v1293 = vadd.f32 0.0, %v1292
        %v1294 = vpop.f32.mrb[0].mxu0
        %1295 = vmatprep.mubr.f32.mxu0 0.0
        %1296 = vmatmul.mubr.f32.gmra.mrb[0].mxu0 %v972
        %v1297 = vpop.f32.mrb[0].mxu0
        %v1298 = vadd.f32 0.0, %v1297
        %v1299 = vpop.f32.mrb[0].mxu0
        %1300 = vmatprep.mubr.f32.mxu0 0.0
        %1301 = vmatmul.mubr.f32.gmra.mrb[0].mxu0 %v975
        %v1302 = vpop.f32.mrb[0].mxu0
        %v1303 = vadd.f32 0.0, %v1302
        %v1304 = vpop.f32.mrb[0].mxu0
        %1305 = vmatprep.mubr.f32.mxu0 0.0
        %1306 = vmatmul.mubr.f32.gmra.mrb[0].mxu0 %v978
        %v1307 = vpop.f32.mrb[0].mxu0
        %v1308 = vadd.f32 0.0, %v1307
        %v1309 = vpop.f32.mrb[0].mxu0
        %1310 = vmatprep.mubr.f32.mxu0 0.0
        %1311 = vmatmul.mubr.f32.gmra.mrb[0].mxu0 %v981
        %v1312 = vpop.f32.mrb[0].mxu0
        %v1313 = vadd.f32 0.0, %v1312
        %v1314 = vpop.f32.mrb[0].mxu0
        %1315 = vmatprep.mubr.f32.mxu0 0.0
        %1316 = vmatmul.mubr.f32.gmra.mrb[0].mxu0 %v984
        %v1317 = vpop.f32.mrb[0].mxu0
        %v1318 = vadd.f32 0.0, %v1317
        %v1319 = vpop.f32.mrb[0].mxu0
        %1320 = vmatprep.mubr.f32.mxu0 0.0
        %1321 = vmatmul.mubr.f32.gmra.mrb[0].mxu0 %v987
        %v1322 = vpop.f32.mrb[0].mxu0
        %v1323 = vadd.f32 0.0, %v1322
        %v1324 = vpop.f32.mrb[0].mxu0
        %1325 = vmatprep.mubr.f32.mxu0 0.0
        %1326 = vmatmul.mubr.f32.gmra.mrb[0].mxu0 %v990
        %v1327 = vpop.f32.mrb[0].mxu0
        %v1328 = vadd.f32 0.0, %v1327
        %v1329 = vpop.f32.mrb[0].mxu0
        %1330 = vmatprep.mubr.f32.mxu0 0.0
        %1331 = vmatmul.mubr.f32.gmra.mrb[0].mxu0 %v993
        %v1332 = vpop.f32.mrb[0].mxu0
        %v1333 = vadd.f32 0.0, %v1332
        %v1334 = vpop.f32.mrb[0].mxu0
        %1335 = vmatprep.mubr.f32.mxu0 0.0
        %1336 = vmatmul.mubr.f32.gmra.mrb[0].mxu0 %v996
        %v1337 = vpop.f32.mrb[0].mxu0
        %v1338 = vadd.f32 0.0, %v1337
        %v1339 = vpop.f32.mrb[0].mxu0
        %1340 = vmatprep.mubr.f32.mxu0 0.0
        %1341 = vmatmul.mubr.f32.gmra.mrb[0].mxu0 %v999
        %v1342 = vpop.f32.mrb[0].mxu0
        %v1343 = vadd.f32 0.0, %v1342
        %v1344 = vpop.f32.mrb[0].mxu0
        %1345 = vmatprep.mubr.f32.mxu0 0.0
        %1346 = vmatmul.mubr.f32.gmra.mrb[0].mxu0 %v1002
        %v1347 = vpop.f32.mrb[0].mxu0
        %v1348 = vadd.f32 0.0, %v1347
        %v1349 = vpop.f32.mrb[0].mxu0
        %1350 = vmatprep.mubr.f32.mxu0 0.0
        %1351 = vmatmul.mubr.f32.gmra.mrb[0].mxu0 %v1005
        %v1352 = vpop.f32.mrb[0].mxu0
        %v1353 = vadd.f32 0.0, %v1352
        %v1354 = vpop.f32.mrb[0].mxu0
        %1355 = vmatprep.mubr.f32.mxu0 0.0
        %1356 = vmatmul.mubr.f32.gmra.mrb[0].mxu0 %v1008
        %v1357 = vpop.f32.mrb[0].mxu0
        %v1358 = vadd.f32 0.0, %v1357
        %v1359 = vpop.f32.mrb[0].mxu0
        %1360 = vmatprep.mubr.f32.mxu0 0.0
        %1361 = vmatmul.mubr.f32.gmra.mrb[0].mxu0 %v1011
        %v1362 = vpop.f32.mrb[0].mxu0
        %v1363 = vadd.f32 0.0, %v1362
        %v1364 = vpop.f32.mrb[0].mxu0
        %1365 = vmatprep.mubr.f32.mxu0 0.0
        %1366 = vmatmul.mubr.f32.gmra.mrb[0].mxu0 %v1014
        %v1367 = vpop.f32.mrb[0].mxu0
        %v1368 = vadd.f32 0.0, %v1367
        %v1369 = vpop.f32.mrb[0].mxu0
        %1370 = vmatprep.mubr.f32.mxu0 0.0
        %1371 = vmatmul.mubr.f32.gmra.mrb[0].mxu0 %v1017
        %v1372 = vpop.f32.mrb[0].mxu0
        %v1373 = vadd.f32 0.0, %v1372
        %v1374 = vpop.f32.mrb[0].mxu0
        %1375 = vmatprep.mubr.f32.mxu0 0.0
        %1376 = vmatmul.mubr.f32.gmra.mrb[0].mxu0 %v1020
        %v1377 = vpop.f32.mrb[0].mxu0
        %v1378 = vadd.f32 0.0, %v1377
        %v1379 = vpop.f32.mrb[0].mxu0
        %1380 = vmatprep.mubr.f32.mxu0 0.0
        %1381 = vmatmul.mubr.f32.gmra.mrb[0].mxu0 %v1023
        %v1382 = vpop.f32.mrb[0].mxu0
        %v1383 = vadd.f32 0.0, %v1382
        %v1384 = vpop.f32.mrb[0].mxu0
        %1385 = vmatprep.mubr.f32.mxu0 0.0
        %1386 = vmatmul.mubr.f32.gmra.mrb[0].mxu0 %v1026
        %v1387 = vpop.f32.mrb[0].mxu0
        %v1388 = vadd.f32 0.0, %v1387
        %v1389 = vpop.f32.mrb[0].mxu0
        %1390 = vmatprep.mubr.f32.mxu0 0.0
        %1391 = vmatmul.mubr.f32.gmra.mrb[0].mxu0 %v1029
        %v1392 = vpop.f32.mrb[0].mxu0
        %v1393 = vadd.f32 0.0, %v1392
        %v1394 = vpop.f32.mrb[0].mxu0
        %1395 = vmatprep.mubr.f32.mxu0 0.0
        %1396 = vmatmul.mubr.f32.gmra.mrb[0].mxu0 %v1032
        %v1397 = vpop.f32.mrb[0].mxu0
        %v1398 = vadd.f32 0.0, %v1397
        %v1399 = vpop.f32.mrb[0].mxu0
        %1400 = vmatprep.mubr.f32.mxu0 0.0
        %1401 = vmatmul.mubr.f32.gmra.mrb[0].mxu0 %v1035
        %v1402 = vpop.f32.mrb[0].mxu0
        %v1403 = vadd.f32 0.0, %v1402
        %v1404 = vpop.f32.mrb[0].mxu0
        %1405 = vmatprep.mubr.f32.mxu0 0.0
        %1406 = vmatmul.mubr.f32.gmra.mrb[0].mxu0 %v1038
        %v1407 = vpop.f32.mrb[0].mxu0
        %v1408 = vadd.f32 0.0, %v1407
        %v1409 = vpop.f32.mrb[0].mxu0
        %1410 = vmatprep.mubr.f32.mxu0 0.0
        %1411 = vmatmul.mubr.f32.gmra.mrb[0].mxu0 %v1041
        %v1412 = vpop.f32.mrb[0].mxu0
        %v1413 = vadd.f32 0.0, %v1412
        %v1414 = vpop.f32.mrb[0].mxu0
        %1415 = vmatprep.mubr.f32.mxu0 0.0
        %1416 = vmatmul.mubr.f32.gmra.mrb[0].mxu0 %v1044
        %v1417 = vpop.f32.mrb[0].mxu0
        %v1418 = vadd.f32 0.0, %v1417
        %v1419 = vpop.f32.mrb[0].mxu0
        %1420 = vmatprep.mubr.f32.mxu0 0.0
        %1421 = vmatmul.mubr.f32.gmra.mrb[0].mxu0 %v1047
        %v1422 = vpop.f32.mrb[0].mxu0
        %v1423 = vadd.f32 0.0, %v1422
        %v1424 = vpop.f32.mrb[0].mxu0
        %1425 = vmatprep.mubr.f32.mxu0 0.0
        %1426 = vmatmul.mubr.f32.gmra.mrb[0].mxu0 %v1050
        %v1427 = vpop.f32.mrb[0].mxu0
        %v1428 = vadd.f32 0.0, %v1427
        %v1429 = vpop.f32.mrb[0].mxu0
        %1430 = vmatprep.mubr.f32.mxu0 0.0
        %1431 = vmatmul.mubr.f32.gmra.mrb[0].mxu0 %v1053
        %v1432 = vpop.f32.mrb[0].mxu0
        %v1433 = vadd.f32 0.0, %v1432
        %v1434 = vpop.f32.mrb[0].mxu0
        %1435 = vmatprep.mubr.f32.mxu0 0.0
        %1436 = vmatmul.mubr.f32.gmra.mrb[0].mxu0 %v1056
        %v1437 = vpop.f32.mrb[0].mxu0
        %v1438 = vadd.f32 0.0, %v1437
        %v1439 = vpop.f32.mrb[0].mxu0
        %1440 = vmatprep.mubr.f32.mxu0 0.0
        %1441 = vmatmul.mubr.f32.gmra.mrb[0].mxu0 %v1059
        %v1442 = vpop.f32.mrb[0].mxu0
        %v1443 = vadd.f32 0.0, %v1442
        %v1444 = vpop.f32.mrb[0].mxu0
        %1445 = vdwg.mxu0
        %v1446 = vld [vmem:[%s3] sm:$0xff]
        %v1447 = vld [vmem:[%s3 + $0x8] sm:$0xff]
        %v1448 = vld [vmem:[%s3 + $0x10] sm:$0xff]
        %v1449 = vld [vmem:[%s3 + $0x18] sm:$0xff]
        %v1450 = vld [vmem:[%s3 + $0x20] sm:$0xff]
        %v1451 = vld [vmem:[%s3 + $0x28] sm:$0xff]
        %v1452 = vld [vmem:[%s3 + $0x30] sm:$0xff]
        %v1453 = vld [vmem:[%s3 + $0x38] sm:$0xff]
        %v1454 = vld [vmem:[%s3 + $0x40] sm:$0xff]
        %v1455 = vld [vmem:[%s3 + $0x48] sm:$0xff]
        %v1456 = vld [vmem:[%s3 + $0x50] sm:$0xff]
        %v1457 = vld [vmem:[%s3 + $0x58] sm:$0xff]
        %v1458 = vld [vmem:[%s3 + $0x60] sm:$0xff]
        %v1459 = vld [vmem:[%s3 + $0x68] sm:$0xff]
        %v1460 = vld [vmem:[%s3 + $0x70] sm:$0xff]
        %v1461 = vld [vmem:[%s3 + $0x78] sm:$0xff]
        %v1462 = vld [vmem:[%s3 + $0x80] sm:$0xff]
        %v1463 = vld [vmem:[%s3 + $0x88] sm:$0xff]
        %v1464 = vld [vmem:[%s3 + $0x90] sm:$0xff]
        %v1465 = vld [vmem:[%s3 + $0x98] sm:$0xff]
        %v1466 = vld [vmem:[%s3 + $0xa0] sm:$0xff]
        %v1467 = vld [vmem:[%s3 + $0xa8] sm:$0xff]
        %v1468 = vld [vmem:[%s3 + $0xb0] sm:$0xff]
        %v1469 = vld [vmem:[%s3 + $0xb8] sm:$0xff]
        %v1470 = vld [vmem:[%s3 + $0xc0] sm:$0xff]
        %v1471 = vld [vmem:[%s3 + $0xc8] sm:$0xff]
        %v1472 = vld [vmem:[%s3 + $0xd0] sm:$0xff]
        %v1473 = vld [vmem:[%s3 + $0xd8] sm:$0xff]
        %v1474 = vld [vmem:[%s3 + $0xe0] sm:$0xff]
        %v1475 = vld [vmem:[%s3 + $0xe8] sm:$0xff]
        %v1476 = vld [vmem:[%s3 + $0xf0] sm:$0xff]
        %v1477 = vld [vmem:[%s3 + $0xf8] sm:$0xff]
        %v1478 = vld [vmem:[%s3 + $0x100] sm:$0xff]
        %v1479 = vld [vmem:[%s3 + $0x108] sm:$0xff]
        %v1480 = vld [vmem:[%s3 + $0x110] sm:$0xff]
        %v1481 = vld [vmem:[%s3 + $0x118] sm:$0xff]
        %v1482 = vld [vmem:[%s3 + $0x120] sm:$0xff]
        %v1483 = vld [vmem:[%s3 + $0x128] sm:$0xff]
        %v1484 = vld [vmem:[%s3 + $0x130] sm:$0xff]
        %v1485 = vld [vmem:[%s3 + $0x138] sm:$0xff]
        %v1486 = vld [vmem:[%s3 + $0x140] sm:$0xff]
        %v1487 = vld [vmem:[%s3 + $0x148] sm:$0xff]
        %v1488 = vld [vmem:[%s3 + $0x150] sm:$0xff]
        %v1489 = vld [vmem:[%s3 + $0x158] sm:$0xff]
        %v1490 = vld [vmem:[%s3 + $0x160] sm:$0xff]
        %v1491 = vld [vmem:[%s3 + $0x168] sm:$0xff]
        %v1492 = vld [vmem:[%s3 + $0x170] sm:$0xff]
        %v1493 = vld [vmem:[%s3 + $0x178] sm:$0xff]
        %v1494 = vld [vmem:[%s3 + $0x180] sm:$0xff]
        %v1495 = vld [vmem:[%s3 + $0x188] sm:$0xff]
        %v1496 = vld [vmem:[%s3 + $0x190] sm:$0xff]
        %v1497 = vld [vmem:[%s3 + $0x198] sm:$0xff]
        %v1498 = vld [vmem:[%s3 + $0x1a0] sm:$0xff]
        %v1499 = vld [vmem:[%s3 + $0x1a8] sm:$0xff]
        %v1500 = vld [vmem:[%s3 + $0x1b0] sm:$0xff]
        %v1501 = vld [vmem:[%s3 + $0x1b8] sm:$0xff]
        %v1502 = vld [vmem:[%s3 + $0x1c0] sm:$0xff]
        %v1503 = vld [vmem:[%s3 + $0x1c8] sm:$0xff]
        %v1504 = vld [vmem:[%s3 + $0x1d0] sm:$0xff]
        %v1505 = vld [vmem:[%s3 + $0x1d8] sm:$0xff]
        %v1506 = vld [vmem:[%s3 + $0x1e0] sm:$0xff]
        %v1507 = vld [vmem:[%s3 + $0x1e8] sm:$0xff]
        %v1508 = vld [vmem:[%s3 + $0x1f0] sm:$0xff]
        %v1509 = vld [vmem:[%s3 + $0x1f8] sm:$0xff]
        %v1510 = vmul.f32 %v1128, %v1446
        %v1511 = vmul.f32 %v1133, %v1447
        %v1512 = vmul.f32 %v1138, %v1448
        %v1513 = vmul.f32 %v1143, %v1449
        %v1514 = vmul.f32 %v1148, %v1450
        %v1515 = vmul.f32 %v1153, %v1451
        %v1516 = vmul.f32 %v1158, %v1452
        %v1517 = vmul.f32 %v1163, %v1453
        %v1518 = vmul.f32 %v1168, %v1454
        %v1519 = vmul.f32 %v1173, %v1455
        %v1520 = vmul.f32 %v1178, %v1456
        %v1521 = vmul.f32 %v1183, %v1457
        %v1522 = vmul.f32 %v1188, %v1458
        %v1523 = vmul.f32 %v1193, %v1459
        %v1524 = vmul.f32 %v1198, %v1460
        %v1525 = vmul.f32 %v1203, %v1461
        %v1526 = vmul.f32 %v1208, %v1462
        %v1527 = vmul.f32 %v1213, %v1463
        %v1528 = vmul.f32 %v1218, %v1464
        %v1529 = vmul.f32 %v1223, %v1465
        %v1530 = vmul.f32 %v1228, %v1466
        %v1531 = vmul.f32 %v1233, %v1467
        %v1532 = vmul.f32 %v1238, %v1468
        %v1533 = vmul.f32 %v1243, %v1469
        %v1534 = vmul.f32 %v1248, %v1470
        %v1535 = vmul.f32 %v1253, %v1471
        %v1536 = vmul.f32 %v1258, %v1472
        %v1537 = vmul.f32 %v1263, %v1473
        %v1538 = vmul.f32 %v1268, %v1474
        %v1539 = vmul.f32 %v1273, %v1475
        %v1540 = vmul.f32 %v1278, %v1476
        %v1541 = vmul.f32 %v1283, %v1477
        %v1542 = vmul.f32 %v1288, %v1478
        %v1543 = vmul.f32 %v1293, %v1479
        %v1544 = vmul.f32 %v1298, %v1480
        %v1545 = vmul.f32 %v1303, %v1481
        %v1546 = vmul.f32 %v1308, %v1482
        %v1547 = vmul.f32 %v1313, %v1483
        %v1548 = vmul.f32 %v1318, %v1484
        %v1549 = vmul.f32 %v1323, %v1485
        %v1550 = vmul.f32 %v1328, %v1486
        %v1551 = vmul.f32 %v1333, %v1487
        %v1552 = vmul.f32 %v1338, %v1488
        %v1553 = vmul.f32 %v1343, %v1489
        %v1554 = vmul.f32 %v1348, %v1490
        %v1555 = vmul.f32 %v1353, %v1491
        %v1556 = vmul.f32 %v1358, %v1492
        %v1557 = vmul.f32 %v1363, %v1493
        %v1558 = vmul.f32 %v1368, %v1494
        %v1559 = vmul.f32 %v1373, %v1495
        %v1560 = vmul.f32 %v1378, %v1496
        %v1561 = vmul.f32 %v1383, %v1497
        %v1562 = vmul.f32 %v1388, %v1498
        %v1563 = vmul.f32 %v1393, %v1499
        %v1564 = vmul.f32 %v1398, %v1500
        %v1565 = vmul.f32 %v1403, %v1501
        %v1566 = vmul.f32 %v1408, %v1502
        %v1567 = vmul.f32 %v1413, %v1503
        %v1568 = vmul.f32 %v1418, %v1504
        %v1569 = vmul.f32 %v1423, %v1505
        %v1570 = vmul.f32 %v1428, %v1506
        %v1571 = vmul.f32 %v1433, %v1507
        %v1572 = vmul.f32 %v1438, %v1508
        %v1573 = vmul.f32 %v1443, %v1509
        %1638 = vrot.lane.b32.xlu0 %v1446, 127
        %v1639 = vpop.permute.xlu0 %1638
        %1640 = vrot.lane.b32.xlu0 %v1447, 127
        %v1641 = vpop.permute.xlu0 %1640
        %1642 = vrot.lane.b32.xlu0 %v1448, 127
        %v1643 = vpop.permute.xlu0 %1642
        %1644 = vrot.lane.b32.xlu0 %v1449, 127
        %v1645 = vpop.permute.xlu0 %1644
        %1646 = vrot.lane.b32.xlu0 %v1450, 127
        %v1647 = vpop.permute.xlu0 %1646
        %1648 = vrot.lane.b32.xlu0 %v1451, 127
        %v1649 = vpop.permute.xlu0 %1648
        %1650 = vrot.lane.b32.xlu0 %v1452, 127
        %v1651 = vpop.permute.xlu0 %1650
        %1652 = vrot.lane.b32.xlu0 %v1453, 127
        %v1653 = vpop.permute.xlu0 %1652
        %1654 = vrot.lane.b32.xlu0 %v1454, 127
        %v1655 = vpop.permute.xlu0 %1654
        %1656 = vrot.lane.b32.xlu0 %v1455, 127
        %v1657 = vpop.permute.xlu0 %1656
        %1658 = vrot.lane.b32.xlu0 %v1456, 127
        %v1659 = vpop.permute.xlu0 %1658
        %1660 = vrot.lane.b32.xlu0 %v1457, 127
        %v1661 = vpop.permute.xlu0 %1660
        %1662 = vrot.lane.b32.xlu0 %v1458, 127
        %v1663 = vpop.permute.xlu0 %1662
        %1664 = vrot.lane.b32.xlu0 %v1459, 127
        %v1665 = vpop.permute.xlu0 %1664
        %1666 = vrot.lane.b32.xlu0 %v1460, 127
        %v1667 = vpop.permute.xlu0 %1666
        %1668 = vrot.lane.b32.xlu0 %v1461, 127
        %v1669 = vpop.permute.xlu0 %1668
        %1670 = vrot.lane.b32.xlu0 %v1462, 127
        %v1671 = vpop.permute.xlu0 %1670
        %1672 = vrot.lane.b32.xlu0 %v1463, 127
        %v1673 = vpop.permute.xlu0 %1672
        %1674 = vrot.lane.b32.xlu0 %v1464, 127
        %v1675 = vpop.permute.xlu0 %1674
        %1676 = vrot.lane.b32.xlu0 %v1465, 127
        %v1677 = vpop.permute.xlu0 %1676
        %1678 = vrot.lane.b32.xlu0 %v1466, 127
        %v1679 = vpop.permute.xlu0 %1678
        %1680 = vrot.lane.b32.xlu0 %v1467, 127
        %v1681 = vpop.permute.xlu0 %1680
        %1682 = vrot.lane.b32.xlu0 %v1468, 127
        %v1683 = vpop.permute.xlu0 %1682
        %1684 = vrot.lane.b32.xlu0 %v1469, 127
        %v1685 = vpop.permute.xlu0 %1684
        %1686 = vrot.lane.b32.xlu0 %v1470, 127
        %v1687 = vpop.permute.xlu0 %1686
        %1688 = vrot.lane.b32.xlu0 %v1471, 127
        %v1689 = vpop.permute.xlu0 %1688
        %1690 = vrot.lane.b32.xlu0 %v1472, 127
        %v1691 = vpop.permute.xlu0 %1690
        %1692 = vrot.lane.b32.xlu0 %v1473, 127
        %v1693 = vpop.permute.xlu0 %1692
        %1694 = vrot.lane.b32.xlu0 %v1474, 127
        %v1695 = vpop.permute.xlu0 %1694
        %1696 = vrot.lane.b32.xlu0 %v1475, 127
        %v1697 = vpop.permute.xlu0 %1696
        %1698 = vrot.lane.b32.xlu0 %v1476, 127
        %v1699 = vpop.permute.xlu0 %1698
        %1700 = vrot.lane.b32.xlu0 %v1477, 127
        %v1701 = vpop.permute.xlu0 %1700
        %1702 = vrot.lane.b32.xlu0 %v1478, 127
        %v1703 = vpop.permute.xlu0 %1702
        %1704 = vrot.lane.b32.xlu0 %v1479, 127
        %v1705 = vpop.permute.xlu0 %1704
        %1706 = vrot.lane.b32.xlu0 %v1480, 127
        %v1707 = vpop.permute.xlu0 %1706
        %1708 = vrot.lane.b32.xlu0 %v1481, 127
        %v1709 = vpop.permute.xlu0 %1708
        %1710 = vrot.lane.b32.xlu0 %v1482, 127
        %v1711 = vpop.permute.xlu0 %1710
        %1712 = vrot.lane.b32.xlu0 %v1483, 127
        %v1713 = vpop.permute.xlu0 %1712
        %1714 = vrot.lane.b32.xlu0 %v1484, 127
        %v1715 = vpop.permute.xlu0 %1714
        %1716 = vrot.lane.b32.xlu0 %v1485, 127
        %v1717 = vpop.permute.xlu0 %1716
        %1718 = vrot.lane.b32.xlu0 %v1486, 127
        %v1719 = vpop.permute.xlu0 %1718
        %1720 = vrot.lane.b32.xlu0 %v1487, 127
        %v1721 = vpop.permute.xlu0 %1720
        %1722 = vrot.lane.b32.xlu0 %v1488, 127
        %v1723 = vpop.permute.xlu0 %1722
        %1724 = vrot.lane.b32.xlu0 %v1489, 127
        %v1725 = vpop.permute.xlu0 %1724
        %1726 = vrot.lane.b32.xlu0 %v1490, 127
        %v1727 = vpop.permute.xlu0 %1726
        %1728 = vrot.lane.b32.xlu0 %v1491, 127
        %v1729 = vpop.permute.xlu0 %1728
        %1730 = vrot.lane.b32.xlu0 %v1492, 127
        %v1731 = vpop.permute.xlu0 %1730
        %1732 = vrot.lane.b32.xlu0 %v1493, 127
        %v1733 = vpop.permute.xlu0 %1732
        %1734 = vrot.lane.b32.xlu0 %v1494, 127
        %v1735 = vpop.permute.xlu0 %1734
        %1736 = vrot.lane.b32.xlu0 %v1495, 127
        %v1737 = vpop.permute.xlu0 %1736
        %1738 = vrot.lane.b32.xlu0 %v1496, 127
        %v1739 = vpop.permute.xlu0 %1738
        %1740 = vrot.lane.b32.xlu0 %v1497, 127
        %v1741 = vpop.permute.xlu0 %1740
        %1742 = vrot.lane.b32.xlu0 %v1498, 127
        %v1743 = vpop.permute.xlu0 %1742
        %1744 = vrot.lane.b32.xlu0 %v1499, 127
        %v1745 = vpop.permute.xlu0 %1744
        %1746 = vrot.lane.b32.xlu0 %v1500, 127
        %v1747 = vpop.permute.xlu0 %1746
        %1748 = vrot.lane.b32.xlu0 %v1501, 127
        %v1749 = vpop.permute.xlu0 %1748
        %1750 = vrot.lane.b32.xlu0 %v1502, 127
        %v1751 = vpop.permute.xlu0 %1750
        %1752 = vrot.lane.b32.xlu0 %v1503, 127
        %v1753 = vpop.permute.xlu0 %1752
        %1754 = vrot.lane.b32.xlu0 %v1504, 127
        %v1755 = vpop.permute.xlu0 %1754
        %1756 = vrot.lane.b32.xlu0 %v1505, 127
        %v1757 = vpop.permute.xlu0 %1756
        %1758 = vrot.lane.b32.xlu0 %v1506, 127
        %v1759 = vpop.permute.xlu0 %1758
        %1760 = vrot.lane.b32.xlu0 %v1507, 127
        %v1761 = vpop.permute.xlu0 %1760
        %1762 = vrot.lane.b32.xlu0 %v1508, 127
        %v1763 = vpop.permute.xlu0 %1762
        %1764 = vrot.lane.b32.xlu0 %v1509, 127
        %v1765 = vpop.permute.xlu0 %1764
        %v1830 = vadd.f32 %v1510, %v1639
        %v1831 = vadd.f32 %v1511, %v1641
        %v1832 = vadd.f32 %v1512, %v1643
        %v1833 = vadd.f32 %v1513, %v1645
        %v1834 = vadd.f32 %v1514, %v1647
        %v1835 = vadd.f32 %v1515, %v1649
        %v1836 = vadd.f32 %v1516, %v1651
        %v1837 = vadd.f32 %v1517, %v1653
        %v1838 = vadd.f32 %v1518, %v1655
        %v1839 = vadd.f32 %v1519, %v1657
        %v1840 = vadd.f32 %v1520, %v1659
        %v1841 = vadd.f32 %v1521, %v1661
        %v1842 = vadd.f32 %v1522, %v1663
        %v1843 = vadd.f32 %v1523, %v1665
        %v1844 = vadd.f32 %v1524, %v1667
        %v1845 = vadd.f32 %v1525, %v1669
        %v1846 = vadd.f32 %v1526, %v1671
        %v1847 = vadd.f32 %v1527, %v1673
        %v1848 = vadd.f32 %v1528, %v1675
        %v1849 = vadd.f32 %v1529, %v1677
        %v1850 = vadd.f32 %v1530, %v1679
        %v1851 = vadd.f32 %v1531, %v1681
        %v1852 = vadd.f32 %v1532, %v1683
        %v1853 = vadd.f32 %v1533, %v1685
        %v1854 = vadd.f32 %v1534, %v1687
        %v1855 = vadd.f32 %v1535, %v1689
        %v1856 = vadd.f32 %v1536, %v1691
        %v1857 = vadd.f32 %v1537, %v1693
        %v1858 = vadd.f32 %v1538, %v1695
        %v1859 = vadd.f32 %v1539, %v1697
        %v1860 = vadd.f32 %v1540, %v1699
        %v1861 = vadd.f32 %v1541, %v1701
        %v1862 = vadd.f32 %v1542, %v1703
        %v1863 = vadd.f32 %v1543, %v1705
        %v1864 = vadd.f32 %v1544, %v1707
        %v1865 = vadd.f32 %v1545, %v1709
        %v1866 = vadd.f32 %v1546, %v1711
        %v1867 = vadd.f32 %v1547, %v1713
        %v1868 = vadd.f32 %v1548, %v1715
        %v1869 = vadd.f32 %v1549, %v1717
        %v1870 = vadd.f32 %v1550, %v1719
        %v1871 = vadd.f32 %v1551, %v1721
        %v1872 = vadd.f32 %v1552, %v1723
        %v1873 = vadd.f32 %v1553, %v1725
        %v1874 = vadd.f32 %v1554, %v1727
        %v1875 = vadd.f32 %v1555, %v1729
        %v1876 = vadd.f32 %v1556, %v1731
        %v1877 = vadd.f32 %v1557, %v1733
        %v1878 = vadd.f32 %v1558, %v1735
        %v1879 = vadd.f32 %v1559, %v1737
        %v1880 = vadd.f32 %v1560, %v1739
        %v1881 = vadd.f32 %v1561, %v1741
        %v1882 = vadd.f32 %v1562, %v1743
        %v1883 = vadd.f32 %v1563, %v1745
        %v1884 = vadd.f32 %v1564, %v1747
        %v1885 = vadd.f32 %v1565, %v1749
        %v1886 = vadd.f32 %v1566, %v1751
        %v1887 = vadd.f32 %v1567, %v1753
        %v1888 = vadd.f32 %v1568, %v1755
        %v1889 = vadd.f32 %v1569, %v1757
        %v1890 = vadd.f32 %v1570, %v1759
        %v1891 = vadd.f32 %v1571, %v1761
        %v1892 = vadd.f32 %v1572, %v1763
        %v1893 = vadd.f32 %v1573, %v1765
        %1894 = vst.msk [vmem:[%s225] sm:$0xff] %vm680, %v1830
        %1895 = vst.msk [vmem:[%s225 + $0x8] sm:$0xff] %vm680, %v1831
        %1896 = vst.msk [vmem:[%s225 + $0x10] sm:$0xff] %vm680, %v1832
        %1897 = vst.msk [vmem:[%s225 + $0x18] sm:$0xff] %vm680, %v1833
        %1898 = vst.msk [vmem:[%s225 + $0x20] sm:$0xff] %vm680, %v1834
        %1899 = vst.msk [vmem:[%s225 + $0x28] sm:$0xff] %vm680, %v1835
        %1900 = vst.msk [vmem:[%s225 + $0x30] sm:$0xff] %vm680, %v1836
        %1901 = vst.msk [vmem:[%s225 + $0x38] sm:$0xff] %vm680, %v1837
        %1902 = vst.msk [vmem:[%s225 + $0x40] sm:$0xff] %vm680, %v1838
        %1903 = vst.msk [vmem:[%s225 + $0x48] sm:$0xff] %vm680, %v1839
        %1904 = vst.msk [vmem:[%s225 + $0x50] sm:$0xff] %vm680, %v1840
        %1905 = vst.msk [vmem:[%s225 + $0x58] sm:$0xff] %vm680, %v1841
        %1906 = vst.msk [vmem:[%s225 + $0x60] sm:$0xff] %vm680, %v1842
        %1907 = vst.msk [vmem:[%s225 + $0x68] sm:$0xff] %vm680, %v1843
        %1908 = vst.msk [vmem:[%s225 + $0x70] sm:$0xff] %vm680, %v1844
        %1909 = vst.msk [vmem:[%s225 + $0x78] sm:$0xff] %vm680, %v1845
        %1910 = vst.msk [vmem:[%s225 + $0x80] sm:$0xff] %vm680, %v1846
        %1911 = vst.msk [vmem:[%s225 + $0x88] sm:$0xff] %vm680, %v1847
        %1912 = vst.msk [vmem:[%s225 + $0x90] sm:$0xff] %vm680, %v1848
        %1913 = vst.msk [vmem:[%s225 + $0x98] sm:$0xff] %vm680, %v1849
        %1914 = vst.msk [vmem:[%s225 + $0xa0] sm:$0xff] %vm680, %v1850
        %1915 = vst.msk [vmem:[%s225 + $0xa8] sm:$0xff] %vm680, %v1851
        %1916 = vst.msk [vmem:[%s225 + $0xb0] sm:$0xff] %vm680, %v1852
        %1917 = vst.msk [vmem:[%s225 + $0xb8] sm:$0xff] %vm680, %v1853
        %1918 = vst.msk [vmem:[%s225 + $0xc0] sm:$0xff] %vm680, %v1854
        %1919 = vst.msk [vmem:[%s225 + $0xc8] sm:$0xff] %vm680, %v1855
        %1920 = vst.msk [vmem:[%s225 + $0xd0] sm:$0xff] %vm680, %v1856
        %1921 = vst.msk [vmem:[%s225 + $0xd8] sm:$0xff] %vm680, %v1857
        %1922 = vst.msk [vmem:[%s225 + $0xe0] sm:$0xff] %vm680, %v1858
        %1923 = vst.msk [vmem:[%s225 + $0xe8] sm:$0xff] %vm680, %v1859
        %1924 = vst.msk [vmem:[%s225 + $0xf0] sm:$0xff] %vm680, %v1860
        %1925 = vst.msk [vmem:[%s225 + $0xf8] sm:$0xff] %vm680, %v1861
        %1926 = vst.msk [vmem:[%s225 + $0x100] sm:$0xff] %vm680, %v1862
        %1927 = vst.msk [vmem:[%s225 + $0x108] sm:$0xff] %vm680, %v1863
        %1928 = vst.msk [vmem:[%s225 + $0x110] sm:$0xff] %vm680, %v1864
        %1929 = vst.msk [vmem:[%s225 + $0x118] sm:$0xff] %vm680, %v1865
        %1930 = vst.msk [vmem:[%s225 + $0x120] sm:$0xff] %vm680, %v1866
        %1931 = vst.msk [vmem:[%s225 + $0x128] sm:$0xff] %vm680, %v1867
        %1932 = vst.msk [vmem:[%s225 + $0x130] sm:$0xff] %vm680, %v1868
        %1933 = vst.msk [vmem:[%s225 + $0x138] sm:$0xff] %vm680, %v1869
        %1934 = vst.msk [vmem:[%s225 + $0x140] sm:$0xff] %vm680, %v1870
        %1935 = vst.msk [vmem:[%s225 + $0x148] sm:$0xff] %vm680, %v1871
        %1936 = vst.msk [vmem:[%s225 + $0x150] sm:$0xff] %vm680, %v1872
        %1937 = vst.msk [vmem:[%s225 + $0x158] sm:$0xff] %vm680, %v1873
        %1938 = vst.msk [vmem:[%s225 + $0x160] sm:$0xff] %vm680, %v1874
        %1939 = vst.msk [vmem:[%s225 + $0x168] sm:$0xff] %vm680, %v1875
        %1940 = vst.msk [vmem:[%s225 + $0x170] sm:$0xff] %vm680, %v1876
        %1941 = vst.msk [vmem:[%s225 + $0x178] sm:$0xff] %vm680, %v1877
        %1942 = vst.msk [vmem:[%s225 + $0x180] sm:$0xff] %vm680, %v1878
        %1943 = vst.msk [vmem:[%s225 + $0x188] sm:$0xff] %vm680, %v1879
        %1944 = vst.msk [vmem:[%s225 + $0x190] sm:$0xff] %vm680, %v1880
        %1945 = vst.msk [vmem:[%s225 + $0x198] sm:$0xff] %vm680, %v1881
        %1946 = vst.msk [vmem:[%s225 + $0x1a0] sm:$0xff] %vm680, %v1882
        %1947 = vst.msk [vmem:[%s225 + $0x1a8] sm:$0xff] %vm680, %v1883
        %1948 = vst.msk [vmem:[%s225 + $0x1b0] sm:$0xff] %vm680, %v1884
        %1949 = vst.msk [vmem:[%s225 + $0x1b8] sm:$0xff] %vm680, %v1885
        %1950 = vst.msk [vmem:[%s225 + $0x1c0] sm:$0xff] %vm680, %v1886
        %1951 = vst.msk [vmem:[%s225 + $0x1c8] sm:$0xff] %vm680, %v1887
        %1952 = vst.msk [vmem:[%s225 + $0x1d0] sm:$0xff] %vm680, %v1888
        %1953 = vst.msk [vmem:[%s225 + $0x1d8] sm:$0xff] %vm680, %v1889
        %1954 = vst.msk [vmem:[%s225 + $0x1e0] sm:$0xff] %vm680, %v1890
        %1955 = vst.msk [vmem:[%s225 + $0x1e8] sm:$0xff] %vm680, %v1891
        %1956 = vst.msk [vmem:[%s225 + $0x1f0] sm:$0xff] %vm680, %v1892
        %1957 = vst.msk [vmem:[%s225 + $0x1f8] sm:$0xff] %vm680, %v1893
      $region44: #{tpu_custom_call.1} parent=35 // pred_fallthru
        _
      %p1958 = scmp.lt.s32.totalorder %s19, 1
      %s1959 = scalar_select %p1958, %s19, 1
      %s1960 = smul.addr %s1959, 64
      %s1961 = smul.addr %s1960, 8
      %s1962 = scalar_lea.vmem %s4, %s1961
      // Predicated region
      $region45: #{tpu_custom_call.1} parent=35 // pred_check
        %p1963 = pneg %p136
      $region46: #{tpu_custom_call.1} parent=35 // pred_check_branch
        %1965 = sbr.rel (%p1963) target = $region48
      $region47: #{tpu_custom_call.1} parent=35 // pred_region
        _
      $region48: #{tpu_custom_call.1} parent=35 // pred_fallthru
        _
    $region36: #{tpu_custom_call.1} parent=5 // pred_fallthru
      _
    %p1966 = scmp.le.s32.totalorder 2, %s10
    // Predicated region
    $region49: #{tpu_custom_call.1} parent=5 // pred_check
      %p1967 = pneg %p1966
    $region50: #{tpu_custom_call.1} parent=5 // pred_check_branch
      %1969 = sbr.rel (%p1967) target = $region52
    $region51: #{tpu_custom_call.1} parent=5 // pred_region
      %s1970 = ssub.s32 %s10, 2
      // Predicated region
      $region53: #{tpu_custom_call.1} parent=51 // pred_check
        %p1971 = pneg %p142
      $region54: #{tpu_custom_call.1} parent=51 // pred_check_branch
        %1973 = sbr.rel (%p1971) target = $region56
      $region55: #{tpu_custom_call.1} parent=51 // pred_region
        %p1974 = scmp.lt.s32.totalorder %s21, 1
        %s1975 = scalar_select %p1974, %s21, 1
        %s1976 = smul.addr %s1975, 64
        %s1977 = smul.addr %s1976, 8
        %s1978 = scalar_lea.vmem %s4, %s1977
      $region56: #{tpu_custom_call.1} parent=51 // pred_fallthru
        _
    $region52: #{tpu_custom_call.1} parent=5 // pred_fallthru
      _
  $region6: #{tpu_custom_call.1} parent=0 // loop_footer
    %s14 = sadd.s32 1, %s10
  $region7: #{tpu_custom_call.1} parent=0 // loop_footer_branch
    %9 = sbr.rel target = $region3
  $region8: #{tpu_custom_call.1} parent=0 // loop_exit
    _

</llo_original>
